<compile_context>
chip_gen: v7x
topology: tpu7x:2x2x1
jax: 0.10.0
libtpu: 0.0.40
codegen_flags: <defaults>
</compile_context>

<pallas_src>
import functools

import jax
import jax.numpy as jnp
from jax import lax
from jax.experimental import pallas as pl
from jax.experimental.pallas import tpu as pltpu


def _self_attention_kernel(x_ref,
                           wq_ref, bq_ref, wk_ref, bk_ref, wv_ref, bv_ref,
                           wo_ref, bo_ref,
                           o_ref,
                           k_scratch, v_scratch, heads_scratch,
                           *, heads, head_dim, q_tile, scale, compute_dtype):
    """One grid step handles (batch n, query-tile qi); all heads in-body."""
    qi = pl.program_id(1)
    cdt = compute_dtype

    # K / V for the full sequence and ALL heads, one (S, E) @ (E, E) matmul each,
    # cached in VMEM scratch. Recomputed only when the batch row changes
    # (qi == 0; qi axis is "arbitrary" so it is visited in order per batch row).
    @pl.when(qi == 0)
    def _project_kv():
        xf = x_ref[0].astype(cdt)                                        # (S, E)
        k_scratch[...] = (jnp.dot(xf, wk_ref[...],
                                  preferred_element_type=jnp.float32)
                          + bk_ref[...]).astype(k_scratch.dtype)
        v_scratch[...] = (jnp.dot(xf, wv_ref[...],
                                  preferred_element_type=jnp.float32)
                          + bv_ref[...]).astype(v_scratch.dtype)

    # Query rows for this tile: a free VMEM view into the resident (S, E) block.
    q_start = pl.multiple_of(qi * q_tile, q_tile)
    xq = x_ref[0, pl.ds(q_start, q_tile), :].astype(cdt)                 # (tq, E)
    q_all = (jnp.dot(xq, wq_ref[...], preferred_element_type=jnp.float32)
             + bq_ref[...])                                              # (tq, E) f32

    k_all = k_scratch[...]
    v_all = v_scratch[...]

    # Per-head attention; head outputs land in their lane slice of the (tq, E)
    # concat buffer so the output projection is a single full-width matmul.
    for h in range(heads):
        lo = h * head_dim
        hi = lo + head_dim
        qh = q_all[:, lo:hi].astype(cdt)                                 # (tq, D)
        kh = k_all[:, lo:hi]                                             # (S, D)
        vh = v_all[:, lo:hi]                                             # (S, D)

        # energy = q @ k^T (contract trailing dims, no XLU transpose); the
        # 1/sqrt(embed_size) scale is applied AFTER the matmul, exactly like the
        # PyTorch reference.
        energy = lax.dot_general(qh, kh, (((1,), (1,)), ((), ())),
                                 preferred_element_type=jnp.float32) * scale

        # Numerically-stable softmax in f32 with an exact divide.
        m = jnp.max(energy, axis=-1, keepdims=True)
        p = jnp.exp(energy - m)
        attn = p / jnp.sum(p, axis=-1, keepdims=True)                    # (tq, S)

        heads_scratch[:, lo:hi] = jnp.dot(attn.astype(cdt), vh,
                                          preferred_element_type=jnp.float32)

    # Single (tq, E) @ (E, E) output projection + bias.
    out = (jnp.dot(heads_scratch[...].astype(cdt), wo_ref[...],
                   preferred_element_type=jnp.float32) + bo_ref[...])
    o_ref[0] = out.astype(o_ref.dtype)


def _pick_q_tile(S, max_tile=128):
    """Largest multiple-of-8 tile <= max_tile dividing S; else the full extent."""
    if S <= max_tile:
        return S
    t = max_tile - (max_tile % 8)
    while t >= 8:
        if S % t == 0:
            return t
        t -= 8
    return S    # full-extent block (always legal)


def self_attention(x, params, *, heads, q_tile=None, compute_dtype=None):
    """x: (N, S, E). params: weights stored as (E_in, E_out) (= torch Linear W^T).

    compute_dtype: dtype fed to the MXU matmuls (accumulation / softmax stay f32).
    bf16 is recommended for production throughput on v5e/v6e/v7x; defaults to
    x.dtype for bit-closer parity with an f32 reference.
    """
    N, S, E = x.shape
    D = E // heads
    assert D * heads == E, "embed_size must be divisible by heads"

    cdt = compute_dtype if compute_dtype is not None else x.dtype
    if q_tile is None:
        q_tile = _pick_q_tile(S)
    assert S % q_tile == 0
    n_q = S // q_tile

    scale = 1.0 / (E ** 0.5)            # embed_size scaling, as in the PyTorch ref
    f32 = jnp.float32

    # Full-width weights (no per-head splitting): fetched once, VMEM-resident.
    wq = params["wq"].astype(cdt)
    wk = params["wk"].astype(cdt)
    wv = params["wv"].astype(cdt)
    wo = params["wo"].astype(cdt)
    bq = params["bq"].reshape(1, E).astype(f32)
    bk = params["bk"].reshape(1, E).astype(f32)
    bv = params["bv"].reshape(1, E).astype(f32)
    bo = params["bo"].reshape(1, E).astype(f32)

    kernel = functools.partial(_self_attention_kernel, heads=heads, head_dim=D,
                               q_tile=q_tile, scale=scale, compute_dtype=cdt)

    # Constant index_maps -> weights/biases stay resident across all grid steps.
    w_spec = pl.BlockSpec((E, E), lambda n, qi: (0, 0))
    b_spec = pl.BlockSpec((1, E), lambda n, qi: (0, 0))

    return pl.pallas_call(
        kernel,
        out_shape=jax.ShapeDtypeStruct((N, S, E), x.dtype),
        grid_spec=pltpu.PrefetchScalarGridSpec(
            num_scalar_prefetch=0,
            grid=(N, n_q),
            in_specs=[
                # x passed ONCE in its native dtype; (1, S, E) block is resident
                # per batch row (query rows are sliced from it in-kernel).
                pl.BlockSpec((1, S, E), lambda n, qi: (n, 0, 0)),
                w_spec, b_spec,     # Wq, bq
                w_spec, b_spec,     # Wk, bk
                w_spec, b_spec,     # Wv, bv
                w_spec, b_spec,     # Wo, bo
            ],
            out_specs=pl.BlockSpec((1, q_tile, E), lambda n, qi: (n, qi, 0)),
            scratch_shapes=[
                pltpu.VMEM((S, E), cdt),             # K cache (all heads)
                pltpu.VMEM((S, E), cdt),             # V cache (all heads)
                pltpu.VMEM((q_tile, E), jnp.float32),  # concat head outputs
            ],
        ),
        compiler_params=pltpu.CompilerParams(
            # Batch axis parallel (megacore); query-tile axis "arbitrary" so the
            # per-batch K/V cache (computed at qi == 0) is visited in order.
            dimension_semantics=("parallel", "arbitrary"),
            vmem_limit_bytes=48 * 1024 * 1024,   # fits v7x's 64 MiB physical VMEM
        ),
    )(x, wq, bq, wk, bk, wv, bv, wo, bo)


def _reference(x, params, heads):
    """Pure-JAX reference mirroring the PyTorch forward exactly."""
    N, S, E = x.shape
    D = E // heads

    def lin(x, w, b):
        return x @ w + b

    q = lin(x, params["wq"], params["bq"]).reshape(N, S, heads, D).transpose(0, 2, 1, 3)
    k = lin(x, params["wk"], params["bk"]).reshape(N, S, heads, D).transpose(0, 2, 1, 3)
    v = lin(x, params["wv"], params["bv"]).reshape(N, S, heads, D).transpose(0, 2, 1, 3)

    energy = jnp.einsum("nhqd,nhkd->nhqk", q, k) / (E ** 0.5)
    attn = jax.nn.softmax(energy, axis=-1)
    out = jnp.einsum("nhqk,nhkd->nhqd", attn, v)
    out = out.transpose(0, 2, 1, 3).reshape(N, S, E)
    return lin(out, params["wo"], params["bo"])


if __name__ == "__main__":
    # Module spec: embed_size=256, heads=8; small batch/sequence.
    N, S, E, H = 2, 8, 256, 8

    key = jax.random.PRNGKey(0)
    keys = jax.random.split(key, 9)

    wscale = 1.0 / jnp.sqrt(jnp.float32(E))
    params = {
        # weights stored as (E_in, E_out) == PyTorch Linear weight transposed
        "wq": jax.random.normal(keys[0], (E, E), jnp.float32) * wscale,
        "bq": jax.random.normal(keys[1], (1, E), jnp.float32) * 0.01,
        "wk": jax.random.normal(keys[2], (E, E), jnp.float32) * wscale,
        "bk": jax.random.normal(keys[3], (1, E), jnp.float32) * 0.01,
        "wv": jax.random.normal(keys[4], (E, E), jnp.float32) * wscale,
        "bv": jax.random.normal(keys[5], (1, E), jnp.float32) * 0.01,
        "wo": jax.random.normal(keys[6], (E, E), jnp.float32) * wscale,
        "bo": jax.random.normal(keys[7], (1, E), jnp.float32) * 0.01,
    }

    x = jax.random.normal(keys[8], (N, S, E), jnp.float32)

    out = self_attention(x, params, heads=H)
    out = jax.block_until_ready(out)

    ref = _reference(x, params, H)
    assert out.shape == (N, S, E)
    max_err = float(jnp.max(jnp.abs(out - ref)))
    assert jnp.allclose(out, ref, atol=2e-3, rtol=2e-3), (
        f"mismatch vs JAX reference (max abs err {max_err})")

    print("KERNEL_OK")
</pallas_src>

<mosaic_0001>
module attributes {stable_mosaic.version = 11 : i64} {
  func.func @_self_attention_kernel(%arg0: i32, %arg1: i32, %arg2: memref<1x8x256xf32, #tpu.memory_space<vmem>>, %arg3: memref<256x256xf32, #tpu.memory_space<vmem>>, %arg4: memref<1x256xf32, #tpu.memory_space<vmem>>, %arg5: memref<256x256xf32, #tpu.memory_space<vmem>>, %arg6: memref<1x256xf32, #tpu.memory_space<vmem>>, %arg7: memref<256x256xf32, #tpu.memory_space<vmem>>, %arg8: memref<1x256xf32, #tpu.memory_space<vmem>>, %arg9: memref<256x256xf32, #tpu.memory_space<vmem>>, %arg10: memref<1x256xf32, #tpu.memory_space<vmem>>, %arg11: memref<1x8x256xf32, #tpu.memory_space<vmem>>, %arg12: memref<8x256xf32, #tpu.memory_space<vmem>>, %arg13: memref<8x256xf32, #tpu.memory_space<vmem>>, %arg14: memref<8x256xf32, #tpu.memory_space<vmem>>) attributes {dimension_semantics = [#tpu.dimension_semantics<parallel>, #tpu.dimension_semantics<arbitrary>], iteration_bounds = array<i64: 2, 1>, scalar_prefetch = 0 : i64, scratch_operands = 3 : i64, tpu.core_type = #tpu.core_type<tc>, window_params = [{transform_indices = @transform_0, window_bounds = array<i64: 1, 8, 256>}, {pipeline_mode = #tpu.pipeline_mode<synchronous>, transform_indices = @transform_1, window_bounds = array<i64: 256, 256>}, {pipeline_mode = #tpu.pipeline_mode<synchronous>, transform_indices = @transform_2, window_bounds = array<i64: 1, 256>}, {pipeline_mode = #tpu.pipeline_mode<synchronous>, transform_indices = @transform_3, window_bounds = array<i64: 256, 256>}, {pipeline_mode = #tpu.pipeline_mode<synchronous>, transform_indices = @transform_4, window_bounds = array<i64: 1, 256>}, {pipeline_mode = #tpu.pipeline_mode<synchronous>, transform_indices = @transform_5, window_bounds = array<i64: 256, 256>}, {pipeline_mode = #tpu.pipeline_mode<synchronous>, transform_indices = @transform_6, window_bounds = array<i64: 1, 256>}, {pipeline_mode = #tpu.pipeline_mode<synchronous>, transform_indices = @transform_7, window_bounds = array<i64: 256, 256>}, {pipeline_mode = #tpu.pipeline_mode<synchronous>, transform_indices = @transform_8, window_bounds = array<i64: 1, 256>}, {transform_indices = @transform_9, window_bounds = array<i64: 1, 8, 256>}]} {
    %c0_i32 = arith.constant 0 : i32
    %0 = arith.cmpi eq, %arg1, %c0_i32 : i32
    %1 = arith.extui %0 : i1 to i32
    %c0_i32_0 = arith.constant 0 : i32
    %2 = arith.cmpi ne, %1, %c0_i32_0 : i32
    scf.if %2 {
      %c0_69 = arith.constant 0 : index
      %c0_70 = arith.constant 0 : index
      %c0_71 = arith.constant 0 : index
      %160 = vector.load %arg2[%c0_69, %c0_70, %c0_71] : memref<1x8x256xf32, #tpu.memory_space<vmem>>, vector<1x8x256xf32>
      %161 = vector.shape_cast %160 : vector<1x8x256xf32> to vector<8x256xf32>
      %c0_72 = arith.constant 0 : index
      %c0_73 = arith.constant 0 : index
      %162 = vector.load %arg5[%c0_72, %c0_73] : memref<256x256xf32, #tpu.memory_space<vmem>>, vector<256x256xf32>
      %cst_74 = arith.constant dense<0.000000e+00> : vector<8x256xf32>
      %163 = tpu.matmul %161, %162, %cst_74 {dimension_numbers = #tpu.dot_dimension_numbers<[1], [0], [0], [1], [0, 0, 1, 1], [], []>} : vector<8x256xf32>, vector<256x256xf32>, vector<8x256xf32> -> vector<8x256xf32>
      %c0_75 = arith.constant 0 : index
      %c0_76 = arith.constant 0 : index
      %164 = vector.load %arg6[%c0_75, %c0_76] : memref<1x256xf32, #tpu.memory_space<vmem>>, vector<1x256xf32>
      %165 = vector.broadcast %164 : vector<1x256xf32> to vector<8x256xf32>
      %166 = arith.addf %163, %165 : vector<8x256xf32>
      %c0_77 = arith.constant 0 : index
      %c0_78 = arith.constant 0 : index
      %167 = vector.load %arg12[%c0_77, %c0_78] : memref<8x256xf32, #tpu.memory_space<vmem>>, vector<8x256xf32>
      tpu.vector_store %arg12[%c0_77, %c0_78], %166 {strides = array<i32>} : memref<8x256xf32, #tpu.memory_space<vmem>>, vector<8x256xf32>,
      %c0_79 = arith.constant 0 : index
      %c0_80 = arith.constant 0 : index
      %168 = vector.load %arg7[%c0_79, %c0_80] : memref<256x256xf32, #tpu.memory_space<vmem>>, vector<256x256xf32>
      %cst_81 = arith.constant dense<0.000000e+00> : vector<8x256xf32>
      %169 = tpu.matmul %161, %168, %cst_81 {dimension_numbers = #tpu.dot_dimension_numbers<[1], [0], [0], [1], [0, 0, 1, 1], [], []>} : vector<8x256xf32>, vector<256x256xf32>, vector<8x256xf32> -> vector<8x256xf32>
      %c0_82 = arith.constant 0 : index
      %c0_83 = arith.constant 0 : index
      %170 = vector.load %arg8[%c0_82, %c0_83] : memref<1x256xf32, #tpu.memory_space<vmem>>, vector<1x256xf32>
      %171 = vector.broadcast %170 : vector<1x256xf32> to vector<8x256xf32>
      %172 = arith.addf %169, %171 : vector<8x256xf32>
      %c0_84 = arith.constant 0 : index
      %c0_85 = arith.constant 0 : index
      %173 = vector.load %arg13[%c0_84, %c0_85] : memref<8x256xf32, #tpu.memory_space<vmem>>, vector<8x256xf32>
      tpu.vector_store %arg13[%c0_84, %c0_85], %172 {strides = array<i32>} : memref<8x256xf32, #tpu.memory_space<vmem>>, vector<8x256xf32>,
    } else {
    }
    %c8_i32 = arith.constant 8 : i32
    %3 = arith.muli %arg1, %c8_i32 : i32
    %4 = tpu.assume_multiple %3, 8 : i32
    %c0 = arith.constant 0 : index
    %5 = arith.index_cast %4 : i32 to index
    %c0_1 = arith.constant 0 : index
    %6 = vector.load %arg2[%c0, %5, %c0_1] : memref<1x8x256xf32, #tpu.memory_space<vmem>>, vector<1x8x256xf32>
    %7 = vector.shape_cast %6 : vector<1x8x256xf32> to vector<8x256xf32>
    %c0_2 = arith.constant 0 : index
    %c0_3 = arith.constant 0 : index
    %8 = vector.load %arg3[%c0_2, %c0_3] : memref<256x256xf32, #tpu.memory_space<vmem>>, vector<256x256xf32>
    %cst = arith.constant dense<0.000000e+00> : vector<8x256xf32>
    %9 = tpu.matmul %7, %8, %cst {dimension_numbers = #tpu.dot_dimension_numbers<[1], [0], [0], [1], [0, 0, 1, 1], [], []>} : vector<8x256xf32>, vector<256x256xf32>, vector<8x256xf32> -> vector<8x256xf32>
    %c0_4 = arith.constant 0 : index
    %c0_5 = arith.constant 0 : index
    %10 = vector.load %arg4[%c0_4, %c0_5] : memref<1x256xf32, #tpu.memory_space<vmem>>, vector<1x256xf32>
    %11 = vector.broadcast %10 : vector<1x256xf32> to vector<8x256xf32>
    %12 = arith.addf %9, %11 : vector<8x256xf32>
    %c0_6 = arith.constant 0 : index
    %c0_7 = arith.constant 0 : index
    %13 = vector.load %arg12[%c0_6, %c0_7] : memref<8x256xf32, #tpu.memory_space<vmem>>, vector<8x256xf32>
    %c0_8 = arith.constant 0 : index
    %c0_9 = arith.constant 0 : index
    %14 = vector.load %arg13[%c0_8, %c0_9] : memref<8x256xf32, #tpu.memory_space<vmem>>, vector<8x256xf32>
    %15 = vector.extract_strided_slice %12 {offsets = [0, 0], sizes = [8, 32], strides = [1, 1]} : vector<8x256xf32> to vector<8x32xf32>
    %16 = vector.extract_strided_slice %13 {offsets = [0, 0], sizes = [8, 32], strides = [1, 1]} : vector<8x256xf32> to vector<8x32xf32>
    %17 = vector.extract_strided_slice %14 {offsets = [0, 0], sizes = [8, 32], strides = [1, 1]} : vector<8x256xf32> to vector<8x32xf32>
    %cst_10 = arith.constant dense<0.000000e+00> : vector<8x8xf32>
    %18 = tpu.matmul %15, %16, %cst_10 {dimension_numbers = #tpu.dot_dimension_numbers<[1], [1], [0], [0], [0, 0, 1, 0], [], []>} : vector<8x32xf32>, vector<8x32xf32>, vector<8x8xf32> -> vector<8x8xf32>
    %cst_11 = arith.constant 6.250000e-02 : f32
    %19 = vector.broadcast %cst_11 : f32 to vector<8x8xf32>
    %20 = arith.mulf %18, %19 : vector<8x8xf32>
    %cst_12 = arith.constant dense<0xFF800000> : vector<8xf32>
    %21 = vector.multi_reduction <maximumf>, %20, %cst_12 [1] : vector<8x8xf32> to vector<8xf32>
    %22 = vector.shape_cast %21 : vector<8xf32> to vector<8x1xf32>
    %23 = vector.broadcast %22 : vector<8x1xf32> to vector<8x8xf32>
    %24 = arith.subf %20, %23 : vector<8x8xf32>
    %25 = math.exp %24 : vector<8x8xf32>
    %cst_13 = arith.constant dense<0.000000e+00> : vector<8xf32>
    %26 = vector.multi_reduction <add>, %25, %cst_13 [1] : vector<8x8xf32> to vector<8xf32>
    %27 = vector.shape_cast %26 : vector<8xf32> to vector<8x1xf32>
    %28 = vector.broadcast %27 : vector<8x1xf32> to vector<8x8xf32>
    %29 = arith.divf %25, %28 : vector<8x8xf32>
    %cst_14 = arith.constant dense<0.000000e+00> : vector<8x32xf32>
    %30 = tpu.matmul %29, %17, %cst_14 {dimension_numbers = #tpu.dot_dimension_numbers<[1], [0], [0], [1], [0, 0, 1, 1], [], []>} : vector<8x8xf32>, vector<8x32xf32>, vector<8x32xf32> -> vector<8x32xf32>
    %c0_15 = arith.constant 0 : index
    %c0_16 = arith.constant 0 : index
    %31 = vector.load %arg14[%c0_15, %c0_16] : memref<8x256xf32, #tpu.memory_space<vmem>>, vector<8x32xf32>
    tpu.vector_store %arg14[%c0_15, %c0_16], %30 {strides = array<i32>} : memref<8x256xf32, #tpu.memory_space<vmem>>, vector<8x32xf32>,
    %32 = vector.extract_strided_slice %12 {offsets = [0, 32], sizes = [8, 32], strides = [1, 1]} : vector<8x256xf32> to vector<8x32xf32>
    %33 = vector.extract_strided_slice %13 {offsets = [0, 32], sizes = [8, 32], strides = [1, 1]} : vector<8x256xf32> to vector<8x32xf32>
    %34 = vector.extract_strided_slice %14 {offsets = [0, 32], sizes = [8, 32], strides = [1, 1]} : vector<8x256xf32> to vector<8x32xf32>
    %cst_17 = arith.constant dense<0.000000e+00> : vector<8x8xf32>
    %35 = tpu.matmul %32, %33, %cst_17 {dimension_numbers = #tpu.dot_dimension_numbers<[1], [1], [0], [0], [0, 0, 1, 0], [], []>} : vector<8x32xf32>, vector<8x32xf32>, vector<8x8xf32> -> vector<8x8xf32>
    %cst_18 = arith.constant 6.250000e-02 : f32
    %36 = vector.broadcast %cst_18 : f32 to vector<8x8xf32>
    %37 = arith.mulf %35, %36 : vector<8x8xf32>
    %cst_19 = arith.constant dense<0xFF800000> : vector<8xf32>
    %38 = vector.multi_reduction <maximumf>, %37, %cst_19 [1] : vector<8x8xf32> to vector<8xf32>
    %39 = vector.shape_cast %38 : vector<8xf32> to vector<8x1xf32>
    %40 = vector.broadcast %39 : vector<8x1xf32> to vector<8x8xf32>
    %41 = arith.subf %37, %40 : vector<8x8xf32>
    %42 = math.exp %41 : vector<8x8xf32>
    %cst_20 = arith.constant dense<0.000000e+00> : vector<8xf32>
    %43 = vector.multi_reduction <add>, %42, %cst_20 [1] : vector<8x8xf32> to vector<8xf32>
    %44 = vector.shape_cast %43 : vector<8xf32> to vector<8x1xf32>
    %45 = vector.broadcast %44 : vector<8x1xf32> to vector<8x8xf32>
    %46 = arith.divf %42, %45 : vector<8x8xf32>
    %cst_21 = arith.constant dense<0.000000e+00> : vector<8x32xf32>
    %47 = tpu.matmul %46, %34, %cst_21 {dimension_numbers = #tpu.dot_dimension_numbers<[1], [0], [0], [1], [0, 0, 1, 1], [], []>} : vector<8x8xf32>, vector<8x32xf32>, vector<8x32xf32> -> vector<8x32xf32>
    %c0_22 = arith.constant 0 : index
    %c32 = arith.constant 32 : index
    %48 = vector.load %arg14[%c0_22, %c32] : memref<8x256xf32, #tpu.memory_space<vmem>>, vector<8x32xf32>
    tpu.vector_store %arg14[%c0_22, %c32], %47 {strides = array<i32>} : memref<8x256xf32, #tpu.memory_space<vmem>>, vector<8x32xf32>,
    %49 = vector.extract_strided_slice %12 {offsets = [0, 64], sizes = [8, 32], strides = [1, 1]} : vector<8x256xf32> to vector<8x32xf32>
    %50 = vector.extract_strided_slice %13 {offsets = [0, 64], sizes = [8, 32], strides = [1, 1]} : vector<8x256xf32> to vector<8x32xf32>
    %51 = vector.extract_strided_slice %14 {offsets = [0, 64], sizes = [8, 32], strides = [1, 1]} : vector<8x256xf32> to vector<8x32xf32>
    %cst_23 = arith.constant dense<0.000000e+00> : vector<8x8xf32>
    %52 = tpu.matmul %49, %50, %cst_23 {dimension_numbers = #tpu.dot_dimension_numbers<[1], [1], [0], [0], [0, 0, 1, 0], [], []>} : vector<8x32xf32>, vector<8x32xf32>, vector<8x8xf32> -> vector<8x8xf32>
    %cst_24 = arith.constant 6.250000e-02 : f32
    %53 = vector.broadcast %cst_24 : f32 to vector<8x8xf32>
    %54 = arith.mulf %52, %53 : vector<8x8xf32>
    %cst_25 = arith.constant dense<0xFF800000> : vector<8xf32>
    %55 = vector.multi_reduction <maximumf>, %54, %cst_25 [1] : vector<8x8xf32> to vector<8xf32>
    %56 = vector.shape_cast %55 : vector<8xf32> to vector<8x1xf32>
    %57 = vector.broadcast %56 : vector<8x1xf32> to vector<8x8xf32>
    %58 = arith.subf %54, %57 : vector<8x8xf32>
    %59 = math.exp %58 : vector<8x8xf32>
    %cst_26 = arith.constant dense<0.000000e+00> : vector<8xf32>
    %60 = vector.multi_reduction <add>, %59, %cst_26 [1] : vector<8x8xf32> to vector<8xf32>
    %61 = vector.shape_cast %60 : vector<8xf32> to vector<8x1xf32>
    %62 = vector.broadcast %61 : vector<8x1xf32> to vector<8x8xf32>
    %63 = arith.divf %59, %62 : vector<8x8xf32>
    %cst_27 = arith.constant dense<0.000000e+00> : vector<8x32xf32>
    %64 = tpu.matmul %63, %51, %cst_27 {dimension_numbers = #tpu.dot_dimension_numbers<[1], [0], [0], [1], [0, 0, 1, 1], [], []>} : vector<8x8xf32>, vector<8x32xf32>, vector<8x32xf32> -> vector<8x32xf32>
    %c0_28 = arith.constant 0 : index
    %c64 = arith.constant 64 : index
    %65 = vector.load %arg14[%c0_28, %c64] : memref<8x256xf32, #tpu.memory_space<vmem>>, vector<8x32xf32>
    tpu.vector_store %arg14[%c0_28, %c64], %64 {strides = array<i32>} : memref<8x256xf32, #tpu.memory_space<vmem>>, vector<8x32xf32>,
    %66 = vector.extract_strided_slice %12 {offsets = [0, 96], sizes = [8, 32], strides = [1, 1]} : vector<8x256xf32> to vector<8x32xf32>
    %67 = vector.extract_strided_slice %13 {offsets = [0, 96], sizes = [8, 32], strides = [1, 1]} : vector<8x256xf32> to vector<8x32xf32>
    %68 = vector.extract_strided_slice %14 {offsets = [0, 96], sizes = [8, 32], strides = [1, 1]} : vector<8x256xf32> to vector<8x32xf32>
    %cst_29 = arith.constant dense<0.000000e+00> : vector<8x8xf32>
    %69 = tpu.matmul %66, %67, %cst_29 {dimension_numbers = #tpu.dot_dimension_numbers<[1], [1], [0], [0], [0, 0, 1, 0], [], []>} : vector<8x32xf32>, vector<8x32xf32>, vector<8x8xf32> -> vector<8x8xf32>
    %cst_30 = arith.constant 6.250000e-02 : f32
    %70 = vector.broadcast %cst_30 : f32 to vector<8x8xf32>
    %71 = arith.mulf %69, %70 : vector<8x8xf32>
    %cst_31 = arith.constant dense<0xFF800000> : vector<8xf32>
    %72 = vector.multi_reduction <maximumf>, %71, %cst_31 [1] : vector<8x8xf32> to vector<8xf32>
    %73 = vector.shape_cast %72 : vector<8xf32> to vector<8x1xf32>
    %74 = vector.broadcast %73 : vector<8x1xf32> to vector<8x8xf32>
    %75 = arith.subf %71, %74 : vector<8x8xf32>
    %76 = math.exp %75 : vector<8x8xf32>
    %cst_32 = arith.constant dense<0.000000e+00> : vector<8xf32>
    %77 = vector.multi_reduction <add>, %76, %cst_32 [1] : vector<8x8xf32> to vector<8xf32>
    %78 = vector.shape_cast %77 : vector<8xf32> to vector<8x1xf32>
    %79 = vector.broadcast %78 : vector<8x1xf32> to vector<8x8xf32>
    %80 = arith.divf %76, %79 : vector<8x8xf32>
    %cst_33 = arith.constant dense<0.000000e+00> : vector<8x32xf32>
    %81 = tpu.matmul %80, %68, %cst_33 {dimension_numbers = #tpu.dot_dimension_numbers<[1], [0], [0], [1], [0, 0, 1, 1], [], []>} : vector<8x8xf32>, vector<8x32xf32>, vector<8x32xf32> -> vector<8x32xf32>
    %c0_34 = arith.constant 0 : index
    %c96 = arith.constant 96 : index
    %82 = vector.load %arg14[%c0_34, %c96] : memref<8x256xf32, #tpu.memory_space<vmem>>, vector<8x32xf32>
    tpu.vector_store %arg14[%c0_34, %c96], %81 {strides = array<i32>} : memref<8x256xf32, #tpu.memory_space<vmem>>, vector<8x32xf32>,
    %83 = vector.extract_strided_slice %12 {offsets = [0, 128], sizes = [8, 32], strides = [1, 1]} : vector<8x256xf32> to vector<8x32xf32>
    %84 = vector.extract_strided_slice %13 {offsets = [0, 128], sizes = [8, 32], strides = [1, 1]} : vector<8x256xf32> to vector<8x32xf32>
    %85 = vector.extract_strided_slice %14 {offsets = [0, 128], sizes = [8, 32], strides = [1, 1]} : vector<8x256xf32> to vector<8x32xf32>
    %cst_35 = arith.constant dense<0.000000e+00> : vector<8x8xf32>
    %86 = tpu.matmul %83, %84, %cst_35 {dimension_numbers = #tpu.dot_dimension_numbers<[1], [1], [0], [0], [0, 0, 1, 0], [], []>} : vector<8x32xf32>, vector<8x32xf32>, vector<8x8xf32> -> vector<8x8xf32>
    %cst_36 = arith.constant 6.250000e-02 : f32
    %87 = vector.broadcast %cst_36 : f32 to vector<8x8xf32>
    %88 = arith.mulf %86, %87 : vector<8x8xf32>
    %cst_37 = arith.constant dense<0xFF800000> : vector<8xf32>
    %89 = vector.multi_reduction <maximumf>, %88, %cst_37 [1] : vector<8x8xf32> to vector<8xf32>
    %90 = vector.shape_cast %89 : vector<8xf32> to vector<8x1xf32>
    %91 = vector.broadcast %90 : vector<8x1xf32> to vector<8x8xf32>
    %92 = arith.subf %88, %91 : vector<8x8xf32>
    %93 = math.exp %92 : vector<8x8xf32>
    %cst_38 = arith.constant dense<0.000000e+00> : vector<8xf32>
    %94 = vector.multi_reduction <add>, %93, %cst_38 [1] : vector<8x8xf32> to vector<8xf32>
    %95 = vector.shape_cast %94 : vector<8xf32> to vector<8x1xf32>
    %96 = vector.broadcast %95 : vector<8x1xf32> to vector<8x8xf32>
    %97 = arith.divf %93, %96 : vector<8x8xf32>
    %cst_39 = arith.constant dense<0.000000e+00> : vector<8x32xf32>
    %98 = tpu.matmul %97, %85, %cst_39 {dimension_numbers = #tpu.dot_dimension_numbers<[1], [0], [0], [1], [0, 0, 1, 1], [], []>} : vector<8x8xf32>, vector<8x32xf32>, vector<8x32xf32> -> vector<8x32xf32>
    %c0_40 = arith.constant 0 : index
    %c128 = arith.constant 128 : index
    %99 = vector.load %arg14[%c0_40, %c128] : memref<8x256xf32, #tpu.memory_space<vmem>>, vector<8x32xf32>
    tpu.vector_store %arg14[%c0_40, %c128], %98 {strides = array<i32>} : memref<8x256xf32, #tpu.memory_space<vmem>>, vector<8x32xf32>,
    %100 = vector.extract_strided_slice %12 {offsets = [0, 160], sizes = [8, 32], strides = [1, 1]} : vector<8x256xf32> to vector<8x32xf32>
    %101 = vector.extract_strided_slice %13 {offsets = [0, 160], sizes = [8, 32], strides = [1, 1]} : vector<8x256xf32> to vector<8x32xf32>
    %102 = vector.extract_strided_slice %14 {offsets = [0, 160], sizes = [8, 32], strides = [1, 1]} : vector<8x256xf32> to vector<8x32xf32>
    %cst_41 = arith.constant dense<0.000000e+00> : vector<8x8xf32>
    %103 = tpu.matmul %100, %101, %cst_41 {dimension_numbers = #tpu.dot_dimension_numbers<[1], [1], [0], [0], [0, 0, 1, 0], [], []>} : vector<8x32xf32>, vector<8x32xf32>, vector<8x8xf32> -> vector<8x8xf32>
    %cst_42 = arith.constant 6.250000e-02 : f32
    %104 = vector.broadcast %cst_42 : f32 to vector<8x8xf32>
    %105 = arith.mulf %103, %104 : vector<8x8xf32>
    %cst_43 = arith.constant dense<0xFF800000> : vector<8xf32>
    %106 = vector.multi_reduction <maximumf>, %105, %cst_43 [1] : vector<8x8xf32> to vector<8xf32>
    %107 = vector.shape_cast %106 : vector<8xf32> to vector<8x1xf32>
    %108 = vector.broadcast %107 : vector<8x1xf32> to vector<8x8xf32>
    %109 = arith.subf %105, %108 : vector<8x8xf32>
    %110 = math.exp %109 : vector<8x8xf32>
    %cst_44 = arith.constant dense<0.000000e+00> : vector<8xf32>
    %111 = vector.multi_reduction <add>, %110, %cst_44 [1] : vector<8x8xf32> to vector<8xf32>
    %112 = vector.shape_cast %111 : vector<8xf32> to vector<8x1xf32>
    %113 = vector.broadcast %112 : vector<8x1xf32> to vector<8x8xf32>
    %114 = arith.divf %110, %113 : vector<8x8xf32>
    %cst_45 = arith.constant dense<0.000000e+00> : vector<8x32xf32>
    %115 = tpu.matmul %114, %102, %cst_45 {dimension_numbers = #tpu.dot_dimension_numbers<[1], [0], [0], [1], [0, 0, 1, 1], [], []>} : vector<8x8xf32>, vector<8x32xf32>, vector<8x32xf32> -> vector<8x32xf32>
    %c0_46 = arith.constant 0 : index
    %c160 = arith.constant 160 : index
    %116 = vector.load %arg14[%c0_46, %c160] : memref<8x256xf32, #tpu.memory_space<vmem>>, vector<8x32xf32>
    tpu.vector_store %arg14[%c0_46, %c160], %115 {strides = array<i32>} : memref<8x256xf32, #tpu.memory_space<vmem>>, vector<8x32xf32>,
    %117 = vector.extract_strided_slice %12 {offsets = [0, 192], sizes = [8, 32], strides = [1, 1]} : vector<8x256xf32> to vector<8x32xf32>
    %118 = vector.extract_strided_slice %13 {offsets = [0, 192], sizes = [8, 32], strides = [1, 1]} : vector<8x256xf32> to vector<8x32xf32>
    %119 = vector.extract_strided_slice %14 {offsets = [0, 192], sizes = [8, 32], strides = [1, 1]} : vector<8x256xf32> to vector<8x32xf32>
    %cst_47 = arith.constant dense<0.000000e+00> : vector<8x8xf32>
    %120 = tpu.matmul %117, %118, %cst_47 {dimension_numbers = #tpu.dot_dimension_numbers<[1], [1], [0], [0], [0, 0, 1, 0], [], []>} : vector<8x32xf32>, vector<8x32xf32>, vector<8x8xf32> -> vector<8x8xf32>
    %cst_48 = arith.constant 6.250000e-02 : f32
    %121 = vector.broadcast %cst_48 : f32 to vector<8x8xf32>
    %122 = arith.mulf %120, %121 : vector<8x8xf32>
    %cst_49 = arith.constant dense<0xFF800000> : vector<8xf32>
    %123 = vector.multi_reduction <maximumf>, %122, %cst_49 [1] : vector<8x8xf32> to vector<8xf32>
    %124 = vector.shape_cast %123 : vector<8xf32> to vector<8x1xf32>
    %125 = vector.broadcast %124 : vector<8x1xf32> to vector<8x8xf32>
    %126 = arith.subf %122, %125 : vector<8x8xf32>
    %127 = math.exp %126 : vector<8x8xf32>
    %cst_50 = arith.constant dense<0.000000e+00> : vector<8xf32>
    %128 = vector.multi_reduction <add>, %127, %cst_50 [1] : vector<8x8xf32> to vector<8xf32>
    %129 = vector.shape_cast %128 : vector<8xf32> to vector<8x1xf32>
    %130 = vector.broadcast %129 : vector<8x1xf32> to vector<8x8xf32>
    %131 = arith.divf %127, %130 : vector<8x8xf32>
    %cst_51 = arith.constant dense<0.000000e+00> : vector<8x32xf32>
    %132 = tpu.matmul %131, %119, %cst_51 {dimension_numbers = #tpu.dot_dimension_numbers<[1], [0], [0], [1], [0, 0, 1, 1], [], []>} : vector<8x8xf32>, vector<8x32xf32>, vector<8x32xf32> -> vector<8x32xf32>
    %c0_52 = arith.constant 0 : index
    %c192 = arith.constant 192 : index
    %133 = vector.load %arg14[%c0_52, %c192] : memref<8x256xf32, #tpu.memory_space<vmem>>, vector<8x32xf32>
    tpu.vector_store %arg14[%c0_52, %c192], %132 {strides = array<i32>} : memref<8x256xf32, #tpu.memory_space<vmem>>, vector<8x32xf32>,
    %134 = vector.extract_strided_slice %12 {offsets = [0, 224], sizes = [8, 32], strides = [1, 1]} : vector<8x256xf32> to vector<8x32xf32>
    %135 = vector.extract_strided_slice %13 {offsets = [0, 224], sizes = [8, 32], strides = [1, 1]} : vector<8x256xf32> to vector<8x32xf32>
    %136 = vector.extract_strided_slice %14 {offsets = [0, 224], sizes = [8, 32], strides = [1, 1]} : vector<8x256xf32> to vector<8x32xf32>
    %cst_53 = arith.constant dense<0.000000e+00> : vector<8x8xf32>
    %137 = tpu.matmul %134, %135, %cst_53 {dimension_numbers = #tpu.dot_dimension_numbers<[1], [1], [0], [0], [0, 0, 1, 0], [], []>} : vector<8x32xf32>, vector<8x32xf32>, vector<8x8xf32> -> vector<8x8xf32>
    %cst_54 = arith.constant 6.250000e-02 : f32
    %138 = vector.broadcast %cst_54 : f32 to vector<8x8xf32>
    %139 = arith.mulf %137, %138 : vector<8x8xf32>
    %cst_55 = arith.constant dense<0xFF800000> : vector<8xf32>
    %140 = vector.multi_reduction <maximumf>, %139, %cst_55 [1] : vector<8x8xf32> to vector<8xf32>
    %141 = vector.shape_cast %140 : vector<8xf32> to vector<8x1xf32>
    %142 = vector.broadcast %141 : vector<8x1xf32> to vector<8x8xf32>
    %143 = arith.subf %139, %142 : vector<8x8xf32>
    %144 = math.exp %143 : vector<8x8xf32>
    %cst_56 = arith.constant dense<0.000000e+00> : vector<8xf32>
    %145 = vector.multi_reduction <add>, %144, %cst_56 [1] : vector<8x8xf32> to vector<8xf32>
    %146 = vector.shape_cast %145 : vector<8xf32> to vector<8x1xf32>
    %147 = vector.broadcast %146 : vector<8x1xf32> to vector<8x8xf32>
    %148 = arith.divf %144, %147 : vector<8x8xf32>
    %cst_57 = arith.constant dense<0.000000e+00> : vector<8x32xf32>
    %149 = tpu.matmul %148, %136, %cst_57 {dimension_numbers = #tpu.dot_dimension_numbers<[1], [0], [0], [1], [0, 0, 1, 1], [], []>} : vector<8x8xf32>, vector<8x32xf32>, vector<8x32xf32> -> vector<8x32xf32>
    %c0_58 = arith.constant 0 : index
    %c224 = arith.constant 224 : index
    %150 = vector.load %arg14[%c0_58, %c224] : memref<8x256xf32, #tpu.memory_space<vmem>>, vector<8x32xf32>
    tpu.vector_store %arg14[%c0_58, %c224], %149 {strides = array<i32>} : memref<8x256xf32, #tpu.memory_space<vmem>>, vector<8x32xf32>,
    %c0_59 = arith.constant 0 : index
    %c0_60 = arith.constant 0 : index
    %151 = vector.load %arg14[%c0_59, %c0_60] : memref<8x256xf32, #tpu.memory_space<vmem>>, vector<8x256xf32>
    %c0_61 = arith.constant 0 : index
    %c0_62 = arith.constant 0 : index
    %152 = vector.load %arg9[%c0_61, %c0_62] : memref<256x256xf32, #tpu.memory_space<vmem>>, vector<256x256xf32>
    %cst_63 = arith.constant dense<0.000000e+00> : vector<8x256xf32>
    %153 = tpu.matmul %151, %152, %cst_63 {dimension_numbers = #tpu.dot_dimension_numbers<[1], [0], [0], [1], [0, 0, 1, 1], [], []>} : vector<8x256xf32>, vector<256x256xf32>, vector<8x256xf32> -> vector<8x256xf32>
    %c0_64 = arith.constant 0 : index
    %c0_65 = arith.constant 0 : index
    %154 = vector.load %arg10[%c0_64, %c0_65] : memref<1x256xf32, #tpu.memory_space<vmem>>, vector<1x256xf32>
    %155 = vector.broadcast %154 : vector<1x256xf32> to vector<8x256xf32>
    %156 = arith.addf %153, %155 : vector<8x256xf32>
    %c0_66 = arith.constant 0 : index
    %c0_67 = arith.constant 0 : index
    %c0_68 = arith.constant 0 : index
    %157 = vector.load %arg11[%c0_66, %c0_67, %c0_68] : memref<1x8x256xf32, #tpu.memory_space<vmem>>, vector<1x8x256xf32>
    %158 = vector.shape_cast %157 : vector<1x8x256xf32> to vector<8x256xf32>
    %159 = vector.shape_cast %156 : vector<8x256xf32> to vector<1x8x256xf32>
    tpu.vector_store %arg11[%c0_66, %c0_67, %c0_68], %159 {strides = array<i32>} : memref<1x8x256xf32, #tpu.memory_space<vmem>>, vector<1x8x256xf32>,
    return
  }
  func.func @transform_0(%arg0: i32, %arg1: i32) -> (i32, i32, i32) {
    %c0_i32 = arith.constant 0 : i32
    %c0_i32_0 = arith.constant 0 : i32
    %c0_i32_1 = arith.constant 0 : i32
    return %arg0, %c0_i32, %c0_i32_0 : i32, i32, i32
  }
  func.func @transform_1(%arg0: i32, %arg1: i32) -> (i32, i32) {
    %c0_i32 = arith.constant 0 : i32
    %c0_i32_0 = arith.constant 0 : i32
    %c0_i32_1 = arith.constant 0 : i32
    return %c0_i32, %c0_i32_0 : i32, i32
  }
  func.func @transform_2(%arg0: i32, %arg1: i32) -> (i32, i32) {
    %c0_i32 = arith.constant 0 : i32
    %c0_i32_0 = arith.constant 0 : i32
    %c0_i32_1 = arith.constant 0 : i32
    return %c0_i32, %c0_i32_0 : i32, i32
  }
  func.func @transform_3(%arg0: i32, %arg1: i32) -> (i32, i32) {
    %c0_i32 = arith.constant 0 : i32
    %c0_i32_0 = arith.constant 0 : i32
    %c0_i32_1 = arith.constant 0 : i32
    return %c0_i32, %c0_i32_0 : i32, i32
  }
  func.func @transform_4(%arg0: i32, %arg1: i32) -> (i32, i32) {
    %c0_i32 = arith.constant 0 : i32
    %c0_i32_0 = arith.constant 0 : i32
    %c0_i32_1 = arith.constant 0 : i32
    return %c0_i32, %c0_i32_0 : i32, i32
  }
  func.func @transform_5(%arg0: i32, %arg1: i32) -> (i32, i32) {
    %c0_i32 = arith.constant 0 : i32
    %c0_i32_0 = arith.constant 0 : i32
    %c0_i32_1 = arith.constant 0 : i32
    return %c0_i32, %c0_i32_0 : i32, i32
  }
  func.func @transform_6(%arg0: i32, %arg1: i32) -> (i32, i32) {
    %c0_i32 = arith.constant 0 : i32
    %c0_i32_0 = arith.constant 0 : i32
    %c0_i32_1 = arith.constant 0 : i32
    return %c0_i32, %c0_i32_0 : i32, i32
  }
  func.func @transform_7(%arg0: i32, %arg1: i32) -> (i32, i32) {
    %c0_i32 = arith.constant 0 : i32
    %c0_i32_0 = arith.constant 0 : i32
    %c0_i32_1 = arith.constant 0 : i32
    return %c0_i32, %c0_i32_0 : i32, i32
  }
  func.func @transform_8(%arg0: i32, %arg1: i32) -> (i32, i32) {
    %c0_i32 = arith.constant 0 : i32
    %c0_i32_0 = arith.constant 0 : i32
    %c0_i32_1 = arith.constant 0 : i32
    return %c0_i32, %c0_i32_0 : i32, i32
  }
  func.func @transform_9(%arg0: i32, %arg1: i32) -> (i32, i32, i32) {
    %c0_i32 = arith.constant 0 : i32
    %c0_i32_0 = arith.constant 0 : i32
    return %arg0, %arg1, %c0_i32 : i32, i32, i32
  }
}

</mosaic_0001>

<llo_original>
// kernel: tpu_custom_call.1
$region0: #{tpu_custom_call.1}
  #allocation0 [shape = 'u32[]', space=smem, size = 0x4, offset = 0x4, fixed_abs, tag = 'smem constant byte address 0x4 - core index']
  #allocation1 [shape = 'u32[144,128]{1,0:T(1,128)}', space=vmem, size = 0x12000, scoped, tag = 'internal scratch']
  #allocation2 [shape = 'f32[8,256]{1,0:T(8,128)}', space=vmem, size = 0x2000, scoped, tag = 'scratch operand']
  #allocation3 [shape = 'f32[8,256]{1,0:T(8,128)}', space=vmem, size = 0x2000, scoped, tag = 'scratch operand']
  #allocation4 [shape = 'f32[8,256]{1,0:T(8,128)}', space=vmem, size = 0x2000, scoped, tag = 'scratch operand']
  %s0 = inlined_call_operand.hbm [shape: f32[2,8,256], index: 0, kind: input, shape index: {}]
  %s1 = inlined_call_operand.hbm [shape: f32[256,256], index: 1, kind: input, shape index: {}]
  %s2 = inlined_call_operand.vmem [shape: f32[1,256], index: 2, kind: input, shape index: {}]
  %s3 = inlined_call_operand.hbm [shape: f32[256,256], index: 3, kind: input, shape index: {}]
  %s4 = inlined_call_operand.vmem [shape: f32[1,256], index: 4, kind: input, shape index: {}]
  %s5 = inlined_call_operand.hbm [shape: f32[256,256], index: 5, kind: input, shape index: {}]
  %s6 = inlined_call_operand.vmem [shape: f32[1,256], index: 6, kind: input, shape index: {}]
  %s7 = inlined_call_operand.hbm [shape: f32[256,256], index: 7, kind: input, shape index: {}]
  %s8 = inlined_call_operand.vmem [shape: f32[1,256], index: 8, kind: input, shape index: {}]
  %s9 = inlined_call_operand.hbm [shape: f32[2,8,256], index: 9, kind: output, shape index: {}]
  %s10 = sld [smem:[#allocation0]]
  $region93: #{tpu_custom_call.1} parent=0
    _
  %s12 = ssub.s32 1, %s10
  %s13 = scalar_select 0, %s12, %s10
  $region1: #{tpu_custom_call.1} parent=0
    #allocation5 [shape = 'u8[16384]{0}', space=vmem, size = 0x4000, scoped, tag = 'input window, operand 0']
    #allocation6 [shape = 's32[2]{0}', space=sflag, size = 0x8, scoped, tag = 'scoped memory for tpu_custom_call.1']
    #allocation7 [shape = 's32[2]{0}', space=sflag, size = 0x8, scoped, tag = 'scoped memory for tpu_custom_call.1']
    #allocation8 [shape = 'u8[262144]{0}', space=vmem, size = 0x40000, scoped, tag = 'input window, operand 1, single buffered']
    #allocation9 [shape = 's32[1]{0}', space=sflag, size = 0x4, scoped, tag = 'scoped memory for tpu_custom_call.1']
    #allocation10 [shape = 'u8[262144]{0}', space=vmem, size = 0x40000, scoped, tag = 'input window, operand 3, single buffered']
    #allocation11 [shape = 'u8[262144]{0}', space=vmem, size = 0x40000, scoped, tag = 'input window, operand 5, single buffered']
    #allocation12 [shape = 's32[1]{0}', space=sflag, size = 0x4, scoped, tag = 'scoped memory for tpu_custom_call.1']
    #allocation13 [shape = 'u8[262144]{0}', space=vmem, size = 0x40000, scoped, tag = 'input window, operand 7, single buffered']
    #allocation14 [shape = 'u8[16384]{0}', space=vmem, size = 0x4000, scoped, tag = 'output window, operand 0']
    %14 = vsyncpa [#allocation6], 0
    %s15 = scalar_lea.sflag [#allocation6], 1
    %16 = vsyncpa %s15, 0
    %17 = vsyncpa [#allocation9], 0
    %18 = vsyncpa [#allocation12], 0
    %19 = vsyncpa [#allocation7], 0
    %s20 = scalar_lea.sflag [#allocation7], 1
    %21 = vsyncpa %s20, 0
    loop: start=0, step=1, limit=4
    $region2: #{tpu_custom_call.1} parent=1 // loop_pre_header
      _
    $region3: #{tpu_custom_call.1} parent=1 // loop_header
      %s23 = sphi 0, %s27
      %p24 = scmp.ge.s32.totalorder %s23, 4
      %s30 = sphi 0, %s42
      %s31 = sphi 0, %s38
      %s32 = sphi 0, %s30
      %s33 = sphi 0, %s31
      %s34 = sphi 0, %s32
      %s35 = sphi 0, %s33
      %s45 = sphi 0, %s47
      %s48 = sphi 0, %s45
      %s49 = sphi 0, %s48
      %s65 = sphi 0, %s49
      %s69 = sphi 0, %s69
      %s71 = sphi 0, %s69
      %s72 = sphi 0, %s71
      %s86 = sphi 0, %s72
      %s90 = sphi 0, %s90
      %s92 = sphi 0, %s90
      %s93 = sphi 0, %s92
      %s107 = sphi 0, %s93
      %s111 = sphi 0, %s111
      %s113 = sphi 0, %s111
      %s114 = sphi 0, %s113
      %s128 = sphi 0, %s114
      %s132 = sphi 0, %s132
      %s134 = sphi 0, %s132
      %s135 = sphi 0, %s134
      %s149 = sphi 0, %s135
      %s153 = sphi 0, %s153
      %s155 = sphi 0, %s153
      %s156 = sphi 0, %s155
      %s170 = sphi 0, %s156
      %s174 = sphi 0, %s174
      %s176 = sphi 0, %s174
      %s177 = sphi 0, %s176
      %s191 = sphi 0, %s177
      %s195 = sphi 0, %s195
      %s197 = sphi 0, %s195
      %s198 = sphi 0, %s197
      %s212 = sphi 0, %s198
      %s216 = sphi 0, %s216
      %s218 = sphi 0, %s216
      %s219 = sphi 0, %s218
      %s233 = sphi 0, %s219
      %s241 = sphi 0, %s243
      %s244 = sphi 0, %s241
      %s245 = sphi 0, %s244
      %s261 = sphi 0, %s245
    $region4: #{tpu_custom_call.1} parent=1 // loop_header_branch
      %26 = sbr.rel (%p24) target = $region8
    $region5: #{tpu_custom_call.1} parent=1 // loop_body
      %s28 = ssub.s32 %s23, 1
      %s29 = ssub.s32 %s23, 2
      %s36 = sadd.s32 1, %s31
      %p37 = scmp.ge.s32.totalorder %s36, 1
      %s38 = scalar_select %p37, 0, %s36
      %s39 = sadd.s32 1, %s30
      %s40 = scalar_select %p37, %s39, %s30
      %p41 = scmp.ge.s32.totalorder %s40, 2
      %s42 = scalar_select %p41, 0, %s40
      %s43 = ssub.s32 %s30, %s42
      %p44 = scmp.eq.s32.totalorder %s43, 0
      %s46 = sadd.s32 %s45, 1
      %s47 = scalar_select %p44, %s45, %s46
      %p50 = pneg %p44
      %p51 = scmp.eq.s32.totalorder %s23, 1
      %p52 = por %p50, %p51
      %p53 = scmp.ne.s32.totalorder %s45, %s48
      %p54 = scmp.eq.s32.totalorder %s23, 0
      %p55 = por %p53, %p54
      %p56 = scmp.ne.s32.totalorder %s45, %s48
      %p57 = scmp.eq.s32.totalorder %s28, 1
      %p58 = por %p56, %p57
      %p59 = scmp.ne.s32.totalorder %s48, %s49
      %p60 = scmp.eq.s32.totalorder %s28, 0
      %p61 = por %p59, %p60
      %p62 = scmp.ne.s32.totalorder %s48, %s49
      %p63 = scmp.eq.s32.totalorder %s29, 1
      %p64 = por %p62, %p63
      %p66 = scmp.ne.s32.totalorder %s49, %s65
      %p67 = scmp.eq.s32.totalorder %s29, 0
      %p68 = por %p66, %p67
      %s70 = sadd.s32 %s69, 1
      %p73 = scmp.eq.s32.totalorder %s23, 1
      %p74 = scmp.ne.s32.totalorder %s69, %s71
      %p75 = scmp.eq.s32.totalorder %s23, 0
      %p76 = por %p74, %p75
      %p77 = scmp.ne.s32.totalorder %s69, %s71
      %p78 = scmp.eq.s32.totalorder %s28, 1
      %p79 = por %p77, %p78
      %p80 = scmp.ne.s32.totalorder %s71, %s72
      %p81 = scmp.eq.s32.totalorder %s28, 0
      %p82 = por %p80, %p81
      %p83 = scmp.ne.s32.totalorder %s71, %s72
      %p84 = scmp.eq.s32.totalorder %s29, 1
      %p85 = por %p83, %p84
      %p87 = scmp.ne.s32.totalorder %s72, %s86
      %p88 = scmp.eq.s32.totalorder %s29, 0
      %p89 = por %p87, %p88
      %s91 = sadd.s32 %s90, 1
      %p94 = scmp.eq.s32.totalorder %s23, 1
      %p95 = scmp.ne.s32.totalorder %s90, %s92
      %p96 = scmp.eq.s32.totalorder %s23, 0
      %p97 = por %p95, %p96
      %p98 = scmp.ne.s32.totalorder %s90, %s92
      %p99 = scmp.eq.s32.totalorder %s28, 1
      %p100 = por %p98, %p99
      %p101 = scmp.ne.s32.totalorder %s92, %s93
      %p102 = scmp.eq.s32.totalorder %s28, 0
      %p103 = por %p101, %p102
      %p104 = scmp.ne.s32.totalorder %s92, %s93
      %p105 = scmp.eq.s32.totalorder %s29, 1
      %p106 = por %p104, %p105
      %p108 = scmp.ne.s32.totalorder %s93, %s107
      %p109 = scmp.eq.s32.totalorder %s29, 0
      %p110 = por %p108, %p109
      %s112 = sadd.s32 %s111, 1
      %p115 = scmp.eq.s32.totalorder %s23, 1
      %p116 = scmp.ne.s32.totalorder %s111, %s113
      %p117 = scmp.eq.s32.totalorder %s23, 0
      %p118 = por %p116, %p117
      %p119 = scmp.ne.s32.totalorder %s111, %s113
      %p120 = scmp.eq.s32.totalorder %s28, 1
      %p121 = por %p119, %p120
      %p122 = scmp.ne.s32.totalorder %s113, %s114
      %p123 = scmp.eq.s32.totalorder %s28, 0
      %p124 = por %p122, %p123
      %p125 = scmp.ne.s32.totalorder %s113, %s114
      %p126 = scmp.eq.s32.totalorder %s29, 1
      %p127 = por %p125, %p126
      %p129 = scmp.ne.s32.totalorder %s114, %s128
      %p130 = scmp.eq.s32.totalorder %s29, 0
      %p131 = por %p129, %p130
      %s133 = sadd.s32 %s132, 1
      %p136 = scmp.eq.s32.totalorder %s23, 1
      %p137 = scmp.ne.s32.totalorder %s132, %s134
      %p138 = scmp.eq.s32.totalorder %s23, 0
      %p139 = por %p137, %p138
      %p140 = scmp.ne.s32.totalorder %s132, %s134
      %p141 = scmp.eq.s32.totalorder %s28, 1
      %p142 = por %p140, %p141
      %p143 = scmp.ne.s32.totalorder %s134, %s135
      %p144 = scmp.eq.s32.totalorder %s28, 0
      %p145 = por %p143, %p144
      %p146 = scmp.ne.s32.totalorder %s134, %s135
      %p147 = scmp.eq.s32.totalorder %s29, 1
      %p148 = por %p146, %p147
      %p150 = scmp.ne.s32.totalorder %s135, %s149
      %p151 = scmp.eq.s32.totalorder %s29, 0
      %p152 = por %p150, %p151
      %s154 = sadd.s32 %s153, 1
      %p157 = scmp.eq.s32.totalorder %s23, 1
      %p158 = scmp.ne.s32.totalorder %s153, %s155
      %p159 = scmp.eq.s32.totalorder %s23, 0
      %p160 = por %p158, %p159
      %p161 = scmp.ne.s32.totalorder %s153, %s155
      %p162 = scmp.eq.s32.totalorder %s28, 1
      %p163 = por %p161, %p162
      %p164 = scmp.ne.s32.totalorder %s155, %s156
      %p165 = scmp.eq.s32.totalorder %s28, 0
      %p166 = por %p164, %p165
      %p167 = scmp.ne.s32.totalorder %s155, %s156
      %p168 = scmp.eq.s32.totalorder %s29, 1
      %p169 = por %p167, %p168
      %p171 = scmp.ne.s32.totalorder %s156, %s170
      %p172 = scmp.eq.s32.totalorder %s29, 0
      %p173 = por %p171, %p172
      %s175 = sadd.s32 %s174, 1
      %p178 = scmp.eq.s32.totalorder %s23, 1
      %p179 = scmp.ne.s32.totalorder %s174, %s176
      %p180 = scmp.eq.s32.totalorder %s23, 0
      %p181 = por %p179, %p180
      %p182 = scmp.ne.s32.totalorder %s174, %s176
      %p183 = scmp.eq.s32.totalorder %s28, 1
      %p184 = por %p182, %p183
      %p185 = scmp.ne.s32.totalorder %s176, %s177
      %p186 = scmp.eq.s32.totalorder %s28, 0
      %p187 = por %p185, %p186
      %p188 = scmp.ne.s32.totalorder %s176, %s177
      %p189 = scmp.eq.s32.totalorder %s29, 1
      %p190 = por %p188, %p189
      %p192 = scmp.ne.s32.totalorder %s177, %s191
      %p193 = scmp.eq.s32.totalorder %s29, 0
      %p194 = por %p192, %p193
      %s196 = sadd.s32 %s195, 1
      %p199 = scmp.eq.s32.totalorder %s23, 1
      %p200 = scmp.ne.s32.totalorder %s195, %s197
      %p201 = scmp.eq.s32.totalorder %s23, 0
      %p202 = por %p200, %p201
      %p203 = scmp.ne.s32.totalorder %s195, %s197
      %p204 = scmp.eq.s32.totalorder %s28, 1
      %p205 = por %p203, %p204
      %p206 = scmp.ne.s32.totalorder %s197, %s198
      %p207 = scmp.eq.s32.totalorder %s28, 0
      %p208 = por %p206, %p207
      %p209 = scmp.ne.s32.totalorder %s197, %s198
      %p210 = scmp.eq.s32.totalorder %s29, 1
      %p211 = por %p209, %p210
      %p213 = scmp.ne.s32.totalorder %s198, %s212
      %p214 = scmp.eq.s32.totalorder %s29, 0
      %p215 = por %p213, %p214
      %s217 = sadd.s32 %s216, 1
      %p220 = scmp.eq.s32.totalorder %s23, 1
      %p221 = scmp.ne.s32.totalorder %s216, %s218
      %p222 = scmp.eq.s32.totalorder %s23, 0
      %p223 = por %p221, %p222
      %p224 = scmp.ne.s32.totalorder %s216, %s218
      %p225 = scmp.eq.s32.totalorder %s28, 1
      %p226 = por %p224, %p225
      %p227 = scmp.ne.s32.totalorder %s218, %s219
      %p228 = scmp.eq.s32.totalorder %s28, 0
      %p229 = por %p227, %p228
      %p230 = scmp.ne.s32.totalorder %s218, %s219
      %p231 = scmp.eq.s32.totalorder %s29, 1
      %p232 = por %p230, %p231
      %p234 = scmp.ne.s32.totalorder %s219, %s233
      %p235 = scmp.eq.s32.totalorder %s29, 0
      %p236 = por %p234, %p235
      %s237 = ssub.s32 %s30, %s42
      %s238 = ssub.s32 %s31, %s38
      %s239 = sor.u32 %s237, %s238
      %p240 = scmp.eq.s32.totalorder %s239, 0
      %s242 = sadd.s32 %s241, 1
      %s243 = scalar_select %p240, %s241, %s242
      %p246 = pneg %p240
      %p247 = scmp.eq.s32.totalorder %s23, 1
      %p248 = por %p246, %p247
      %p249 = scmp.ne.s32.totalorder %s241, %s244
      %p250 = scmp.eq.s32.totalorder %s23, 0
      %p251 = por %p249, %p250
      %p252 = scmp.ne.s32.totalorder %s241, %s244
      %p253 = scmp.eq.s32.totalorder %s28, 1
      %p254 = por %p252, %p253
      %p255 = scmp.ne.s32.totalorder %s244, %s245
      %p256 = scmp.eq.s32.totalorder %s28, 0
      %p257 = por %p255, %p256
      %p258 = scmp.ne.s32.totalorder %s244, %s245
      %p259 = scmp.eq.s32.totalorder %s29, 1
      %p260 = por %p258, %p259
      %p262 = scmp.ne.s32.totalorder %s245, %s261
      %p263 = scmp.eq.s32.totalorder %s29, 0
      %p264 = por %p262, %p263
      %p265 = scmp.le.s32.totalorder 1, %s23
      %p266 = scmp.lt.s32.totalorder %s23, 3
      %p267 = pnand %p265, %p266
      %p268 = pneg %p267
      // Predicated region
      $region9: #{tpu_custom_call.1} parent=5 // pred_check
        _
      $region10: #{tpu_custom_call.1} parent=5 // pred_check_branch
        %270 = sbr.rel (%p267) target = $region12
      $region11: #{tpu_custom_call.1} parent=5 // pred_region
        %s271 = ssub.s32 %s23, 1
        // Predicated region
        $region13: #{tpu_custom_call.1} parent=11 // pred_check
          %p272 = pneg %p82
        $region14: #{tpu_custom_call.1} parent=11 // pred_check_branch
          %274 = sbr.rel (%p272) target = $region16
        $region15: #{tpu_custom_call.1} parent=11 // pred_region
          %s276 = ssub.s32 8192, 8192
          %277 = vsyncadd [#allocation9], %s276
          %s278 = sshll.u32 [#allocation8], 4
          %s279 = int_to_ptr.vmem [resolvable:$true] %s278
          %284 = dma.hbm_to_vmem [thread:$0]  %s1, 8192, %s279, [#allocation9], 256, 256, 16
        $region16: #{tpu_custom_call.1} parent=11 // pred_fallthru
          _
        // Predicated region
        $region17: #{tpu_custom_call.1} parent=11 // pred_check
          %p285 = pneg %p103
        $region18: #{tpu_custom_call.1} parent=11 // pred_check_branch
          %287 = sbr.rel (%p285) target = $region20
        $region19: #{tpu_custom_call.1} parent=11 // pred_region
          _
        $region20: #{tpu_custom_call.1} parent=11 // pred_fallthru
          _
        // Predicated region
        $region21: #{tpu_custom_call.1} parent=11 // pred_check
          %p288 = pneg %p124
        $region22: #{tpu_custom_call.1} parent=11 // pred_check_branch
          %290 = sbr.rel (%p288) target = $region24
        $region23: #{tpu_custom_call.1} parent=11 // pred_region
          %s292 = ssub.s32 8192, 8192
          %293 = vsyncadd [#allocation9], %s292
          %s294 = sshll.u32 [#allocation10], 4
          %s295 = int_to_ptr.vmem [resolvable:$true] %s294
          %300 = dma.hbm_to_vmem [thread:$0]  %s3, 8192, %s295, [#allocation9], 256, 256, 16
        $region24: #{tpu_custom_call.1} parent=11 // pred_fallthru
          _
        // Predicated region
        $region25: #{tpu_custom_call.1} parent=11 // pred_check
          %p301 = pneg %p145
        $region26: #{tpu_custom_call.1} parent=11 // pred_check_branch
          %303 = sbr.rel (%p301) target = $region28
        $region27: #{tpu_custom_call.1} parent=11 // pred_region
          _
        $region28: #{tpu_custom_call.1} parent=11 // pred_fallthru
          _
        // Predicated region
        $region29: #{tpu_custom_call.1} parent=11 // pred_check
          %p304 = pneg %p166
        $region30: #{tpu_custom_call.1} parent=11 // pred_check_branch
          %306 = sbr.rel (%p304) target = $region32
        $region31: #{tpu_custom_call.1} parent=11 // pred_region
          %s308 = ssub.s32 8192, 8192
          %309 = vsyncadd [#allocation12], %s308
          %s310 = sshll.u32 [#allocation11], 4
          %s311 = int_to_ptr.vmem [resolvable:$true] %s310
          %316 = dma.hbm_to_vmem [thread:$0]  %s5, 8192, %s311, [#allocation12], 256, 256, 16
        $region32: #{tpu_custom_call.1} parent=11 // pred_fallthru
          _
        // Predicated region
        $region33: #{tpu_custom_call.1} parent=11 // pred_check
          %p317 = pneg %p187
        $region34: #{tpu_custom_call.1} parent=11 // pred_check_branch
          %319 = sbr.rel (%p317) target = $region36
        $region35: #{tpu_custom_call.1} parent=11 // pred_region
          _
        $region36: #{tpu_custom_call.1} parent=11 // pred_fallthru
          _
        // Predicated region
        $region37: #{tpu_custom_call.1} parent=11 // pred_check
          %p320 = pneg %p208
        $region38: #{tpu_custom_call.1} parent=11 // pred_check_branch
          %322 = sbr.rel (%p320) target = $region40
        $region39: #{tpu_custom_call.1} parent=11 // pred_region
          %s324 = ssub.s32 8192, 8192
          %325 = vsyncadd [#allocation12], %s324
          %s326 = sshll.u32 [#allocation13], 4
          %s327 = int_to_ptr.vmem [resolvable:$true] %s326
          %332 = dma.hbm_to_vmem [thread:$0]  %s7, 8192, %s327, [#allocation12], 256, 256, 16
        $region40: #{tpu_custom_call.1} parent=11 // pred_fallthru
          _
        // Predicated region
        $region41: #{tpu_custom_call.1} parent=11 // pred_check
          %p333 = pneg %p229
        $region42: #{tpu_custom_call.1} parent=11 // pred_check_branch
          %335 = sbr.rel (%p333) target = $region44
        $region43: #{tpu_custom_call.1} parent=11 // pred_region
          _
        $region44: #{tpu_custom_call.1} parent=11 // pred_fallthru
          _
      $region12: #{tpu_custom_call.1} parent=5 // pred_fallthru
        _
      %p336 = scmp.lt.s32.totalorder %s23, 2
      // Predicated region
      $region45: #{tpu_custom_call.1} parent=5 // pred_check
        %p337 = pneg %p336
      $region46: #{tpu_custom_call.1} parent=5 // pred_check_branch
        %339 = sbr.rel (%p337) target = $region48
      $region47: #{tpu_custom_call.1} parent=5 // pred_region
        // Predicated region
        $region49: #{tpu_custom_call.1} parent=47 // pred_check
          %p340 = pneg %p55
        $region50: #{tpu_custom_call.1} parent=47 // pred_check_branch
          %342 = sbr.rel (%p340) target = $region52
        $region51: #{tpu_custom_call.1} parent=47 // pred_region
          %s343 = sand.u32 %s45, 1
          %s344 = scalar_lea.sflag [#allocation6], %s343
          %s345 = sand.u32 %s45, 1
          %s346 = smul.addr %s345, 16
          %s347 = scalar_lea.vmem [#allocation5], %s346
          %s349 = ssub.s32 256, 256
          %350 = vsyncadd %s344, %s349
          %s351 = smul.addr %s30, 2
          %s352 = smul.addr %s351, 128
          %s353 = scalar_lea.hbm %s0, %s352
          %s355 = sshll.u32 %s347, 4
          %s356 = int_to_ptr.vmem [resolvable:$true] %s355
          %358 = dma.hbm_to_vmem [thread:$0]  %s353, 256, %s356, %s344
        $region52: #{tpu_custom_call.1} parent=47 // pred_fallthru
          _
      $region48: #{tpu_custom_call.1} parent=5 // pred_fallthru
        _
      %p359 = scmp.le.s32.totalorder 1, %s23
      %p360 = scmp.lt.s32.totalorder %s23, 3
      %p361 = pnand %p359, %p360
      %p362 = pneg %p361
      // Predicated region
      $region53: #{tpu_custom_call.1} parent=5 // pred_check
        _
      $region54: #{tpu_custom_call.1} parent=5 // pred_check_branch
        %364 = sbr.rel (%p361) target = $region56
      $region55: #{tpu_custom_call.1} parent=5 // pred_region
        %s365 = ssub.s32 %s23, 1
        %s366 = sand.u32 %s48, 1
        %s367 = scalar_lea.sflag [#allocation6], %s366
        %s368 = sand.u32 %s48, 1
        %s369 = smul.addr %s368, 16
        %s370 = scalar_lea.vmem [#allocation5], %s369
        // Predicated region
        $region57: #{tpu_custom_call.1} parent=55 // pred_check
          %p371 = pneg %p61
        $region58: #{tpu_custom_call.1} parent=55 // pred_check_branch
          %373 = sbr.rel (%p371) target = $region60
        $region59: #{tpu_custom_call.1} parent=55 // pred_region
          %374 = dma.done %s367, 256
        $region60: #{tpu_custom_call.1} parent=55 // pred_fallthru
          _
        // Predicated region
        $region61: #{tpu_custom_call.1} parent=55 // pred_check
          %p375 = pneg %p82
        $region62: #{tpu_custom_call.1} parent=55 // pred_check_branch
          %377 = sbr.rel (%p375) target = $region64
        $region63: #{tpu_custom_call.1} parent=55 // pred_region
          %378 = dma.done [#allocation9], 8192
        $region64: #{tpu_custom_call.1} parent=55 // pred_fallthru
          _
        // Predicated region
        $region65: #{tpu_custom_call.1} parent=55 // pred_check
          %p379 = pneg %p124
        $region66: #{tpu_custom_call.1} parent=55 // pred_check_branch
          %381 = sbr.rel (%p379) target = $region68
        $region67: #{tpu_custom_call.1} parent=55 // pred_region
          %382 = dma.done [#allocation9], 8192
        $region68: #{tpu_custom_call.1} parent=55 // pred_fallthru
          _
        // Predicated region
        $region69: #{tpu_custom_call.1} parent=55 // pred_check
          %p383 = pneg %p166
        $region70: #{tpu_custom_call.1} parent=55 // pred_check_branch
          %385 = sbr.rel (%p383) target = $region72
        $region71: #{tpu_custom_call.1} parent=55 // pred_region
          %386 = dma.done [#allocation12], 8192
        $region72: #{tpu_custom_call.1} parent=55 // pred_fallthru
          _
        // Predicated region
        $region73: #{tpu_custom_call.1} parent=55 // pred_check
          %p387 = pneg %p208
        $region74: #{tpu_custom_call.1} parent=55 // pred_check_branch
          %389 = sbr.rel (%p387) target = $region76
        $region75: #{tpu_custom_call.1} parent=55 // pred_region
          %390 = dma.done [#allocation12], 8192
        $region76: #{tpu_custom_call.1} parent=55 // pred_fallthru
          _
        %s391 = sand.u32 %s48, 1
        %s392 = scalar_lea.sflag [#allocation6], %s391
        %s393 = sand.u32 %s48, 1
        %s394 = smul.addr %s393, 16
        %s395 = scalar_lea.vmem [#allocation5], %s394
        %p396 = pneg %p61
        %p397 = pneg %p58
        %p398 = pneg %p82
        %p399 = pneg %p79
        %p400 = pneg %p103
        %p401 = pneg %p100
        %p402 = pneg %p124
        %p403 = pneg %p121
        %p404 = pneg %p145
        %p405 = pneg %p142
        %p406 = pneg %p166
        %p407 = pneg %p163
        %p408 = pneg %p187
        %p409 = pneg %p184
        %p410 = pneg %p208
        %p411 = pneg %p205
        %p412 = pneg %p229
        %p413 = pneg %p226
        %p414 = pneg %p257
        %p415 = pneg %p254
        %s416 = sand.u32 %s244, 1
        %s417 = scalar_lea.sflag [#allocation7], %s416
        %s418 = sand.u32 %s244, 1
        %s419 = smul.addr %s418, 16
        %s420 = scalar_lea.vmem [#allocation14], %s419
        %p421 = scmp.eq.s32.totalorder %s33, 0
        // Predicated region
        $region77: #{tpu_custom_call.1} parent=55 // pred_check
          %p422 = pneg %p421
        $region78: #{tpu_custom_call.1} parent=55 // pred_check_branch
          %424 = sbr.rel (%p422) target = $region80
        $region79: #{tpu_custom_call.1} parent=55 // pred_region
          %v425 = vld [vmem:[%s370] sm:$0xff]
          %v426 = vld [vmem:[%s370 + $0x8] sm:$0xff]
          %v427 = vld [vmem:[#allocation10] sm:$0xff]
          %v428 = vld [vmem:[#allocation10 + $0x8] sm:$0xff]
          %v429 = vld [vmem:[#allocation10 + $0x10] sm:$0xff]
          %v430 = vld [vmem:[#allocation10 + $0x18] sm:$0xff]
          %v431 = vld [vmem:[#allocation10 + $0x20] sm:$0xff]
          %v432 = vld [vmem:[#allocation10 + $0x28] sm:$0xff]
          %v433 = vld [vmem:[#allocation10 + $0x30] sm:$0xff]
          %v434 = vld [vmem:[#allocation10 + $0x38] sm:$0xff]
          %v435 = vld [vmem:[#allocation10 + $0x40] sm:$0xff]
          %v436 = vld [vmem:[#allocation10 + $0x48] sm:$0xff]
          %v437 = vld [vmem:[#allocation10 + $0x50] sm:$0xff]
          %v438 = vld [vmem:[#allocation10 + $0x58] sm:$0xff]
          %v439 = vld [vmem:[#allocation10 + $0x60] sm:$0xff]
          %v440 = vld [vmem:[#allocation10 + $0x68] sm:$0xff]
          %v441 = vld [vmem:[#allocation10 + $0x70] sm:$0xff]
          %v442 = vld [vmem:[#allocation10 + $0x78] sm:$0xff]
          %v443 = vld [vmem:[#allocation10 + $0x80] sm:$0xff]
          %v444 = vld [vmem:[#allocation10 + $0x88] sm:$0xff]
          %v445 = vld [vmem:[#allocation10 + $0x90] sm:$0xff]
          %v446 = vld [vmem:[#allocation10 + $0x98] sm:$0xff]
          %v447 = vld [vmem:[#allocation10 + $0xa0] sm:$0xff]
          %v448 = vld [vmem:[#allocation10 + $0xa8] sm:$0xff]
          %v449 = vld [vmem:[#allocation10 + $0xb0] sm:$0xff]
          %v450 = vld [vmem:[#allocation10 + $0xb8] sm:$0xff]
          %v451 = vld [vmem:[#allocation10 + $0xc0] sm:$0xff]
          %v452 = vld [vmem:[#allocation10 + $0xc8] sm:$0xff]
          %v453 = vld [vmem:[#allocation10 + $0xd0] sm:$0xff]
          %v454 = vld [vmem:[#allocation10 + $0xd8] sm:$0xff]
          %v455 = vld [vmem:[#allocation10 + $0xe0] sm:$0xff]
          %v456 = vld [vmem:[#allocation10 + $0xe8] sm:$0xff]
          %v457 = vld [vmem:[#allocation10 + $0xf0] sm:$0xff]
          %v458 = vld [vmem:[#allocation10 + $0xf8] sm:$0xff]
          %v459 = vld [vmem:[#allocation10 + $0x100] sm:$0xff]
          %v460 = vld [vmem:[#allocation10 + $0x108] sm:$0xff]
          %v461 = vld [vmem:[#allocation10 + $0x110] sm:$0xff]
          %v462 = vld [vmem:[#allocation10 + $0x118] sm:$0xff]
          %v463 = vld [vmem:[#allocation10 + $0x120] sm:$0xff]
          %v464 = vld [vmem:[#allocation10 + $0x128] sm:$0xff]
          %v465 = vld [vmem:[#allocation10 + $0x130] sm:$0xff]
          %v466 = vld [vmem:[#allocation10 + $0x138] sm:$0xff]
          %v467 = vld [vmem:[#allocation10 + $0x140] sm:$0xff]
          %v468 = vld [vmem:[#allocation10 + $0x148] sm:$0xff]
          %v469 = vld [vmem:[#allocation10 + $0x150] sm:$0xff]
          %v470 = vld [vmem:[#allocation10 + $0x158] sm:$0xff]
          %v471 = vld [vmem:[#allocation10 + $0x160] sm:$0xff]
          %v472 = vld [vmem:[#allocation10 + $0x168] sm:$0xff]
          %v473 = vld [vmem:[#allocation10 + $0x170] sm:$0xff]
          %v474 = vld [vmem:[#allocation10 + $0x178] sm:$0xff]
          %v475 = vld [vmem:[#allocation10 + $0x180] sm:$0xff]
          %v476 = vld [vmem:[#allocation10 + $0x188] sm:$0xff]
          %v477 = vld [vmem:[#allocation10 + $0x190] sm:$0xff]
          %v478 = vld [vmem:[#allocation10 + $0x198] sm:$0xff]
          %v479 = vld [vmem:[#allocation10 + $0x1a0] sm:$0xff]
          %v480 = vld [vmem:[#allocation10 + $0x1a8] sm:$0xff]
          %v481 = vld [vmem:[#allocation10 + $0x1b0] sm:$0xff]
          %v482 = vld [vmem:[#allocation10 + $0x1b8] sm:$0xff]
          %v483 = vld [vmem:[#allocation10 + $0x1c0] sm:$0xff]
          %v484 = vld [vmem:[#allocation10 + $0x1c8] sm:$0xff]
          %v485 = vld [vmem:[#allocation10 + $0x1d0] sm:$0xff]
          %v486 = vld [vmem:[#allocation10 + $0x1d8] sm:$0xff]
          %v487 = vld [vmem:[#allocation10 + $0x1e0] sm:$0xff]
          %v488 = vld [vmem:[#allocation10 + $0x1e8] sm:$0xff]
          %v489 = vld [vmem:[#allocation10 + $0x1f0] sm:$0xff]
          %v490 = vld [vmem:[#allocation10 + $0x1f8] sm:$0xff]
          %v491 = vld [vmem:[%s4] sm:$0x3]
          %v493 = vlaneseq
          %v494 = vshrl.u32 %v493, 7
          %v495 = vsub.s32 0, %v494
          %v496 = vrot.slane %v491, %v495
          %v497 = vlaneseq
          %v498 = vshrl.u32 %v497, 7
          %v499 = vsub.s32 1, %v498
          %v500 = vrot.slane %v491, %v499
          %503 = vmatprep.subr.mxu0 %v428
          %504 = vmatpush1.msra.mxu0 %v427
          %505 = vmatprep.subr.mxu0 %v430
          %506 = vmatpush1.msra.mxu0 %v429
          %507 = vmatprep.subr.mxu0 %v432
          %508 = vmatpush1.msra.mxu0 %v431
          %509 = vmatprep.subr.mxu0 %v434
          %510 = vmatpush1.msra.mxu0 %v433
          %511 = vmatprep.subr.mxu0 %v436
          %512 = vmatpush1.msra.mxu0 %v435
          %513 = vmatprep.subr.mxu0 %v438
          %514 = vmatpush1.msra.mxu0 %v437
          %515 = vmatprep.subr.mxu0 %v440
          %516 = vmatpush1.msra.mxu0 %v439
          %517 = vmatprep.subr.mxu0 %v442
          %518 = vmatpush1.msra.mxu0 %v441
          %519 = vmatprep.subr.mxu0 %v444
          %520 = vmatpush1.msra.mxu0 %v443
          %521 = vmatprep.subr.mxu0 %v446
          %522 = vmatpush1.msra.mxu0 %v445
          %523 = vmatprep.subr.mxu0 %v448
          %524 = vmatpush1.msra.mxu0 %v447
          %525 = vmatprep.subr.mxu0 %v450
          %526 = vmatpush1.msra.mxu0 %v449
          %527 = vmatprep.subr.mxu0 %v452
          %528 = vmatpush1.msra.mxu0 %v451
          %529 = vmatprep.subr.mxu0 %v454
          %530 = vmatpush1.msra.mxu0 %v453
          %531 = vmatprep.subr.mxu0 %v456
          %532 = vmatpush1.msra.mxu0 %v455
          %533 = vmatprep.subr.mxu0 %v458
          %534 = vmatpush1.msra.mxu0 %v457
          %535 = vmatprep.subr.mxu0 %v460
          %536 = vmatpush1.msra.mxu0 %v459
          %537 = vmatprep.subr.mxu0 %v462
          %538 = vmatpush1.msra.mxu0 %v461
          %539 = vmatprep.subr.mxu0 %v464
          %540 = vmatpush1.msra.mxu0 %v463
          %541 = vmatprep.subr.mxu0 %v466
          %542 = vmatpush1.msra.mxu0 %v465
          %543 = vmatprep.subr.mxu0 %v468
          %544 = vmatpush1.msra.mxu0 %v467
          %545 = vmatprep.subr.mxu0 %v470
          %546 = vmatpush1.msra.mxu0 %v469
          %547 = vmatprep.subr.mxu0 %v472
          %548 = vmatpush1.msra.mxu0 %v471
          %549 = vmatprep.subr.mxu0 %v474
          %550 = vmatpush1.msra.mxu0 %v473
          %551 = vmatprep.subr.mxu0 %v476
          %552 = vmatpush1.msra.mxu0 %v475
          %553 = vmatprep.subr.mxu0 %v478
          %554 = vmatpush1.msra.mxu0 %v477
          %555 = vmatprep.subr.mxu0 %v480
          %556 = vmatpush1.msra.mxu0 %v479
          %557 = vmatprep.subr.mxu0 %v482
          %558 = vmatpush1.msra.mxu0 %v481
          %559 = vmatprep.subr.mxu0 %v484
          %560 = vmatpush1.msra.mxu0 %v483
          %561 = vmatprep.subr.mxu0 %v486
          %562 = vmatpush1.msra.mxu0 %v485
          %563 = vmatprep.subr.mxu0 %v488
          %564 = vmatpush1.msra.mxu0 %v487
          %565 = vmatprep.subr.mxu0 %v490
          %566 = vmatpush1.msra.mxu0 %v489
          %567 = vmatprep.mubr.f32.mxu0 %v426
          %568 = vmatmul.mubr.f32.gmra.mrb[0].mxu0 %v425
          %v569 = vpop.f32.mrb[0].mxu0
          %v570 = vadd.f32 %v496, %v569
          %v571 = vpop.f32.mrb[0].mxu0
          %v572 = vadd.f32 %v500, %v571
          %573 = vdwg.mxu0
          %574 = vst [vmem:[#allocation2] sm:$0xff] %v570
          %575 = vst [vmem:[#allocation2 + $0x8] sm:$0xff] %v572
          %v576 = vld [vmem:[#allocation11] sm:$0xff]
          %v577 = vld [vmem:[#allocation11 + $0x8] sm:$0xff]
          %v578 = vld [vmem:[#allocation11 + $0x10] sm:$0xff]
          %v579 = vld [vmem:[#allocation11 + $0x18] sm:$0xff]
          %v580 = vld [vmem:[#allocation11 + $0x20] sm:$0xff]
          %v581 = vld [vmem:[#allocation11 + $0x28] sm:$0xff]
          %v582 = vld [vmem:[#allocation11 + $0x30] sm:$0xff]
          %v583 = vld [vmem:[#allocation11 + $0x38] sm:$0xff]
          %v584 = vld [vmem:[#allocation11 + $0x40] sm:$0xff]
          %v585 = vld [vmem:[#allocation11 + $0x48] sm:$0xff]
          %v586 = vld [vmem:[#allocation11 + $0x50] sm:$0xff]
          %v587 = vld [vmem:[#allocation11 + $0x58] sm:$0xff]
          %v588 = vld [vmem:[#allocation11 + $0x60] sm:$0xff]
          %v589 = vld [vmem:[#allocation11 + $0x68] sm:$0xff]
          %v590 = vld [vmem:[#allocation11 + $0x70] sm:$0xff]
          %v591 = vld [vmem:[#allocation11 + $0x78] sm:$0xff]
          %v592 = vld [vmem:[#allocation11 + $0x80] sm:$0xff]
          %v593 = vld [vmem:[#allocation11 + $0x88] sm:$0xff]
          %v594 = vld [vmem:[#allocation11 + $0x90] sm:$0xff]
          %v595 = vld [vmem:[#allocation11 + $0x98] sm:$0xff]
          %v596 = vld [vmem:[#allocation11 + $0xa0] sm:$0xff]
          %v597 = vld [vmem:[#allocation11 + $0xa8] sm:$0xff]
          %v598 = vld [vmem:[#allocation11 + $0xb0] sm:$0xff]
          %v599 = vld [vmem:[#allocation11 + $0xb8] sm:$0xff]
          %v600 = vld [vmem:[#allocation11 + $0xc0] sm:$0xff]
          %v601 = vld [vmem:[#allocation11 + $0xc8] sm:$0xff]
          %v602 = vld [vmem:[#allocation11 + $0xd0] sm:$0xff]
          %v603 = vld [vmem:[#allocation11 + $0xd8] sm:$0xff]
          %v604 = vld [vmem:[#allocation11 + $0xe0] sm:$0xff]
          %v605 = vld [vmem:[#allocation11 + $0xe8] sm:$0xff]
          %v606 = vld [vmem:[#allocation11 + $0xf0] sm:$0xff]
          %v607 = vld [vmem:[#allocation11 + $0xf8] sm:$0xff]
          %v608 = vld [vmem:[#allocation11 + $0x100] sm:$0xff]
          %v609 = vld [vmem:[#allocation11 + $0x108] sm:$0xff]
          %v610 = vld [vmem:[#allocation11 + $0x110] sm:$0xff]
          %v611 = vld [vmem:[#allocation11 + $0x118] sm:$0xff]
          %v612 = vld [vmem:[#allocation11 + $0x120] sm:$0xff]
          %v613 = vld [vmem:[#allocation11 + $0x128] sm:$0xff]
          %v614 = vld [vmem:[#allocation11 + $0x130] sm:$0xff]
          %v615 = vld [vmem:[#allocation11 + $0x138] sm:$0xff]
          %v616 = vld [vmem:[#allocation11 + $0x140] sm:$0xff]
          %v617 = vld [vmem:[#allocation11 + $0x148] sm:$0xff]
          %v618 = vld [vmem:[#allocation11 + $0x150] sm:$0xff]
          %v619 = vld [vmem:[#allocation11 + $0x158] sm:$0xff]
          %v620 = vld [vmem:[#allocation11 + $0x160] sm:$0xff]
          %v621 = vld [vmem:[#allocation11 + $0x168] sm:$0xff]
          %v622 = vld [vmem:[#allocation11 + $0x170] sm:$0xff]
          %v623 = vld [vmem:[#allocation11 + $0x178] sm:$0xff]
          %v624 = vld [vmem:[#allocation11 + $0x180] sm:$0xff]
          %v625 = vld [vmem:[#allocation11 + $0x188] sm:$0xff]
          %v626 = vld [vmem:[#allocation11 + $0x190] sm:$0xff]
          %v627 = vld [vmem:[#allocation11 + $0x198] sm:$0xff]
          %v628 = vld [vmem:[#allocation11 + $0x1a0] sm:$0xff]
          %v629 = vld [vmem:[#allocation11 + $0x1a8] sm:$0xff]
          %v630 = vld [vmem:[#allocation11 + $0x1b0] sm:$0xff]
          %v631 = vld [vmem:[#allocation11 + $0x1b8] sm:$0xff]
          %v632 = vld [vmem:[#allocation11 + $0x1c0] sm:$0xff]
          %v633 = vld [vmem:[#allocation11 + $0x1c8] sm:$0xff]
          %v634 = vld [vmem:[#allocation11 + $0x1d0] sm:$0xff]
          %v635 = vld [vmem:[#allocation11 + $0x1d8] sm:$0xff]
          %v636 = vld [vmem:[#allocation11 + $0x1e0] sm:$0xff]
          %v637 = vld [vmem:[#allocation11 + $0x1e8] sm:$0xff]
          %v638 = vld [vmem:[#allocation11 + $0x1f0] sm:$0xff]
          %v639 = vld [vmem:[#allocation11 + $0x1f8] sm:$0xff]
          %v640 = vld [vmem:[%s6] sm:$0x3]
          %v642 = vlaneseq
          %v643 = vshrl.u32 %v642, 7
          %v644 = vsub.s32 0, %v643
          %v645 = vrot.slane %v640, %v644
          %v646 = vlaneseq
          %v647 = vshrl.u32 %v646, 7
          %v648 = vsub.s32 1, %v647
          %v649 = vrot.slane %v640, %v648
          %652 = vmatprep.subr.mxu0 %v577
          %653 = vmatpush1.msra.mxu0 %v576
          %654 = vmatprep.subr.mxu0 %v579
          %655 = vmatpush1.msra.mxu0 %v578
          %656 = vmatprep.subr.mxu0 %v581
          %657 = vmatpush1.msra.mxu0 %v580
          %658 = vmatprep.subr.mxu0 %v583
          %659 = vmatpush1.msra.mxu0 %v582
          %660 = vmatprep.subr.mxu0 %v585
          %661 = vmatpush1.msra.mxu0 %v584
          %662 = vmatprep.subr.mxu0 %v587
          %663 = vmatpush1.msra.mxu0 %v586
          %664 = vmatprep.subr.mxu0 %v589
          %665 = vmatpush1.msra.mxu0 %v588
          %666 = vmatprep.subr.mxu0 %v591
          %667 = vmatpush1.msra.mxu0 %v590
          %668 = vmatprep.subr.mxu0 %v593
          %669 = vmatpush1.msra.mxu0 %v592
          %670 = vmatprep.subr.mxu0 %v595
          %671 = vmatpush1.msra.mxu0 %v594
          %672 = vmatprep.subr.mxu0 %v597
          %673 = vmatpush1.msra.mxu0 %v596
          %674 = vmatprep.subr.mxu0 %v599
          %675 = vmatpush1.msra.mxu0 %v598
          %676 = vmatprep.subr.mxu0 %v601
          %677 = vmatpush1.msra.mxu0 %v600
          %678 = vmatprep.subr.mxu0 %v603
          %679 = vmatpush1.msra.mxu0 %v602
          %680 = vmatprep.subr.mxu0 %v605
          %681 = vmatpush1.msra.mxu0 %v604
          %682 = vmatprep.subr.mxu0 %v607
          %683 = vmatpush1.msra.mxu0 %v606
          %684 = vmatprep.subr.mxu0 %v609
          %685 = vmatpush1.msra.mxu0 %v608
          %686 = vmatprep.subr.mxu0 %v611
          %687 = vmatpush1.msra.mxu0 %v610
          %688 = vmatprep.subr.mxu0 %v613
          %689 = vmatpush1.msra.mxu0 %v612
          %690 = vmatprep.subr.mxu0 %v615
          %691 = vmatpush1.msra.mxu0 %v614
          %692 = vmatprep.subr.mxu0 %v617
          %693 = vmatpush1.msra.mxu0 %v616
          %694 = vmatprep.subr.mxu0 %v619
          %695 = vmatpush1.msra.mxu0 %v618
          %696 = vmatprep.subr.mxu0 %v621
          %697 = vmatpush1.msra.mxu0 %v620
          %698 = vmatprep.subr.mxu0 %v623
          %699 = vmatpush1.msra.mxu0 %v622
          %700 = vmatprep.subr.mxu0 %v625
          %701 = vmatpush1.msra.mxu0 %v624
          %702 = vmatprep.subr.mxu0 %v627
          %703 = vmatpush1.msra.mxu0 %v626
          %704 = vmatprep.subr.mxu0 %v629
          %705 = vmatpush1.msra.mxu0 %v628
          %706 = vmatprep.subr.mxu0 %v631
          %707 = vmatpush1.msra.mxu0 %v630
          %708 = vmatprep.subr.mxu0 %v633
          %709 = vmatpush1.msra.mxu0 %v632
          %710 = vmatprep.subr.mxu0 %v635
          %711 = vmatpush1.msra.mxu0 %v634
          %712 = vmatprep.subr.mxu0 %v637
          %713 = vmatpush1.msra.mxu0 %v636
          %714 = vmatprep.subr.mxu0 %v639
          %715 = vmatpush1.msra.mxu0 %v638
          %716 = vmatprep.mubr.f32.mxu0 %v426
          %717 = vmatmul.mubr.f32.gmra.mrb[0].mxu0 %v425
          %v718 = vpop.f32.mrb[0].mxu0
          %v719 = vadd.f32 %v645, %v718
          %v720 = vpop.f32.mrb[0].mxu0
          %v721 = vadd.f32 %v649, %v720
          %722 = vdwg.mxu0
          %723 = vst [vmem:[#allocation3] sm:$0xff] %v719
          %724 = vst [vmem:[#allocation3 + $0x8] sm:$0xff] %v721
        $region80: #{tpu_custom_call.1} parent=55 // pred_fallthru
          _
        %s725 = smul.u32 %s33, 8
        %s726 = sshra.s32 %s725, 3
        %s727 = sand.u32 %s725, 7
        %s728 = smul.u32 %s726, 2
        %s729 = smul.addr %s728, 8
        %s730 = scalar_lea.vmem %s370, %s729 [#allocation5]
        %v731 = vld [vmem:[%s730] sm:$0xff]
        %v732 = vld [vmem:[%s730 + $0x8] sm:$0xff]
        %v733 = vld [vmem:[#allocation8] sm:$0xff]
        %v734 = vld [vmem:[#allocation8 + $0x8] sm:$0xff]
        %v735 = vld [vmem:[#allocation8 + $0x10] sm:$0xff]
        %v736 = vld [vmem:[#allocation8 + $0x18] sm:$0xff]
        %v737 = vld [vmem:[#allocation8 + $0x20] sm:$0xff]
        %v738 = vld [vmem:[#allocation8 + $0x28] sm:$0xff]
        %v739 = vld [vmem:[#allocation8 + $0x30] sm:$0xff]
        %v740 = vld [vmem:[#allocation8 + $0x38] sm:$0xff]
        %v741 = vld [vmem:[#allocation8 + $0x40] sm:$0xff]
        %v742 = vld [vmem:[#allocation8 + $0x48] sm:$0xff]
        %v743 = vld [vmem:[#allocation8 + $0x50] sm:$0xff]
        %v744 = vld [vmem:[#allocation8 + $0x58] sm:$0xff]
        %v745 = vld [vmem:[#allocation8 + $0x60] sm:$0xff]
        %v746 = vld [vmem:[#allocation8 + $0x68] sm:$0xff]
        %v747 = vld [vmem:[#allocation8 + $0x70] sm:$0xff]
        %v748 = vld [vmem:[#allocation8 + $0x78] sm:$0xff]
        %v749 = vld [vmem:[#allocation8 + $0x80] sm:$0xff]
        %v750 = vld [vmem:[#allocation8 + $0x88] sm:$0xff]
        %v751 = vld [vmem:[#allocation8 + $0x90] sm:$0xff]
        %v752 = vld [vmem:[#allocation8 + $0x98] sm:$0xff]
        %v753 = vld [vmem:[#allocation8 + $0xa0] sm:$0xff]
        %v754 = vld [vmem:[#allocation8 + $0xa8] sm:$0xff]
        %v755 = vld [vmem:[#allocation8 + $0xb0] sm:$0xff]
        %v756 = vld [vmem:[#allocation8 + $0xb8] sm:$0xff]
        %v757 = vld [vmem:[#allocation8 + $0xc0] sm:$0xff]
        %v758 = vld [vmem:[#allocation8 + $0xc8] sm:$0xff]
        %v759 = vld [vmem:[#allocation8 + $0xd0] sm:$0xff]
        %v760 = vld [vmem:[#allocation8 + $0xd8] sm:$0xff]
        %v761 = vld [vmem:[#allocation8 + $0xe0] sm:$0xff]
        %v762 = vld [vmem:[#allocation8 + $0xe8] sm:$0xff]
        %v763 = vld [vmem:[#allocation8 + $0xf0] sm:$0xff]
        %v764 = vld [vmem:[#allocation8 + $0xf8] sm:$0xff]
        %v765 = vld [vmem:[#allocation8 + $0x100] sm:$0xff]
        %v766 = vld [vmem:[#allocation8 + $0x108] sm:$0xff]
        %v767 = vld [vmem:[#allocation8 + $0x110] sm:$0xff]
        %v768 = vld [vmem:[#allocation8 + $0x118] sm:$0xff]
        %v769 = vld [vmem:[#allocation8 + $0x120] sm:$0xff]
        %v770 = vld [vmem:[#allocation8 + $0x128] sm:$0xff]
        %v771 = vld [vmem:[#allocation8 + $0x130] sm:$0xff]
        %v772 = vld [vmem:[#allocation8 + $0x138] sm:$0xff]
        %v773 = vld [vmem:[#allocation8 + $0x140] sm:$0xff]
        %v774 = vld [vmem:[#allocation8 + $0x148] sm:$0xff]
        %v775 = vld [vmem:[#allocation8 + $0x150] sm:$0xff]
        %v776 = vld [vmem:[#allocation8 + $0x158] sm:$0xff]
        %v777 = vld [vmem:[#allocation8 + $0x160] sm:$0xff]
        %v778 = vld [vmem:[#allocation8 + $0x168] sm:$0xff]
        %v779 = vld [vmem:[#allocation8 + $0x170] sm:$0xff]
        %v780 = vld [vmem:[#allocation8 + $0x178] sm:$0xff]
        %v781 = vld [vmem:[#allocation8 + $0x180] sm:$0xff]
        %v782 = vld [vmem:[#allocation8 + $0x188] sm:$0xff]
        %v783 = vld [vmem:[#allocation8 + $0x190] sm:$0xff]
        %v784 = vld [vmem:[#allocation8 + $0x198] sm:$0xff]
        %v785 = vld [vmem:[#allocation8 + $0x1a0] sm:$0xff]
        %v786 = vld [vmem:[#allocation8 + $0x1a8] sm:$0xff]
        %v787 = vld [vmem:[#allocation8 + $0x1b0] sm:$0xff]
        %v788 = vld [vmem:[#allocation8 + $0x1b8] sm:$0xff]
        %v789 = vld [vmem:[#allocation8 + $0x1c0] sm:$0xff]
        %v790 = vld [vmem:[#allocation8 + $0x1c8] sm:$0xff]
        %v791 = vld [vmem:[#allocation8 + $0x1d0] sm:$0xff]
        %v792 = vld [vmem:[#allocation8 + $0x1d8] sm:$0xff]
        %v793 = vld [vmem:[#allocation8 + $0x1e0] sm:$0xff]
        %v794 = vld [vmem:[#allocation8 + $0x1e8] sm:$0xff]
        %v795 = vld [vmem:[#allocation8 + $0x1f0] sm:$0xff]
        %v796 = vld [vmem:[#allocation8 + $0x1f8] sm:$0xff]
        %v797 = vld [vmem:[%s2] sm:$0x3]
        %v799 = vlaneseq
        %v800 = vshrl.u32 %v799, 7
        %v801 = vsub.s32 0, %v800
        %v802 = vrot.slane %v797, %v801
        %v803 = vlaneseq
        %v804 = vshrl.u32 %v803, 7
        %v805 = vsub.s32 1, %v804
        %v806 = vrot.slane %v797, %v805
        %809 = vmatprep.subr.mxu0 %v734
        %810 = vmatpush1.msra.mxu0 %v733
        %811 = vmatprep.subr.mxu0 %v736
        %812 = vmatpush1.msra.mxu0 %v735
        %813 = vmatprep.subr.mxu0 %v738
        %814 = vmatpush1.msra.mxu0 %v737
        %815 = vmatprep.subr.mxu0 %v740
        %816 = vmatpush1.msra.mxu0 %v739
        %817 = vmatprep.subr.mxu0 %v742
        %818 = vmatpush1.msra.mxu0 %v741
        %819 = vmatprep.subr.mxu0 %v744
        %820 = vmatpush1.msra.mxu0 %v743
        %821 = vmatprep.subr.mxu0 %v746
        %822 = vmatpush1.msra.mxu0 %v745
        %823 = vmatprep.subr.mxu0 %v748
        %824 = vmatpush1.msra.mxu0 %v747
        %825 = vmatprep.subr.mxu0 %v750
        %826 = vmatpush1.msra.mxu0 %v749
        %827 = vmatprep.subr.mxu0 %v752
        %828 = vmatpush1.msra.mxu0 %v751
        %829 = vmatprep.subr.mxu0 %v754
        %830 = vmatpush1.msra.mxu0 %v753
        %831 = vmatprep.subr.mxu0 %v756
        %832 = vmatpush1.msra.mxu0 %v755
        %833 = vmatprep.subr.mxu0 %v758
        %834 = vmatpush1.msra.mxu0 %v757
        %835 = vmatprep.subr.mxu0 %v760
        %836 = vmatpush1.msra.mxu0 %v759
        %837 = vmatprep.subr.mxu0 %v762
        %838 = vmatpush1.msra.mxu0 %v761
        %839 = vmatprep.subr.mxu0 %v764
        %840 = vmatpush1.msra.mxu0 %v763
        %841 = vmatprep.subr.mxu0 %v766
        %842 = vmatpush1.msra.mxu0 %v765
        %843 = vmatprep.subr.mxu0 %v768
        %844 = vmatpush1.msra.mxu0 %v767
        %845 = vmatprep.subr.mxu0 %v770
        %846 = vmatpush1.msra.mxu0 %v769
        %847 = vmatprep.subr.mxu0 %v772
        %848 = vmatpush1.msra.mxu0 %v771
        %849 = vmatprep.subr.mxu0 %v774
        %850 = vmatpush1.msra.mxu0 %v773
        %851 = vmatprep.subr.mxu0 %v776
        %852 = vmatpush1.msra.mxu0 %v775
        %853 = vmatprep.subr.mxu0 %v778
        %854 = vmatpush1.msra.mxu0 %v777
        %855 = vmatprep.subr.mxu0 %v780
        %856 = vmatpush1.msra.mxu0 %v779
        %857 = vmatprep.subr.mxu0 %v782
        %858 = vmatpush1.msra.mxu0 %v781
        %859 = vmatprep.subr.mxu0 %v784
        %860 = vmatpush1.msra.mxu0 %v783
        %861 = vmatprep.subr.mxu0 %v786
        %862 = vmatpush1.msra.mxu0 %v785
        %863 = vmatprep.subr.mxu0 %v788
        %864 = vmatpush1.msra.mxu0 %v787
        %865 = vmatprep.subr.mxu0 %v790
        %866 = vmatpush1.msra.mxu0 %v789
        %867 = vmatprep.subr.mxu0 %v792
        %868 = vmatpush1.msra.mxu0 %v791
        %869 = vmatprep.subr.mxu0 %v794
        %870 = vmatpush1.msra.mxu0 %v793
        %871 = vmatprep.subr.mxu0 %v796
        %872 = vmatpush1.msra.mxu0 %v795
        %873 = vmatprep.mubr.f32.mxu0 %v732
        %874 = vmatmul.mubr.f32.gmra.mrb[0].mxu0 %v731
        %v875 = vpop.f32.mrb[0].mxu0
        %v876 = vadd.f32 %v802, %v875
        %v877 = vpop.f32.mrb[0].mxu0
        %v878 = vadd.f32 %v806, %v877
        %879 = vdwg.mxu0
        %v880 = vld [vmem:[#allocation2] sm:$0xff]
        %v881 = vld [vmem:[#allocation2 + $0x8] sm:$0xff]
        %v882 = vld [vmem:[#allocation3] sm:$0xff]
        %v883 = vld [vmem:[#allocation3 + $0x8] sm:$0xff]
        %vm884 = vcmask 261120
        %v886 = vsel %vm884, %v876, 0
        %v889 = vsel %vm884, %v880, 0
        %891 = vmatprep.subr.mxu0 0.0
        %892 = vmatpush1.xpose.msra.mxu0 %v889
        %893 = vmatprep.subr.mxu0 0.0
        %894 = vmatpush1.xpose.msra.mxu0 0.0
        %895 = vmatprep.subr.mxu0 0.0
        %896 = vmatpush1.xpose.msra.mxu0 0.0
        %897 = vmatprep.subr.mxu0 0.0
        %898 = vmatpush1.xpose.msra.mxu0 0.0
        %899 = vmatprep.subr.mxu0 0.0
        %900 = vmatpush1.xpose.msra.mxu0 0.0
        %901 = vmatprep.subr.mxu0 0.0
        %902 = vmatpush1.xpose.msra.mxu0 0.0
        %903 = vmatprep.subr.mxu0 0.0
        %904 = vmatpush1.xpose.msra.mxu0 0.0
        %905 = vmatprep.subr.mxu0 0.0
        %906 = vmatpush1.xpose.msra.mxu0 0.0
        %907 = vmatprep.subr.mxu0 0.0
        %908 = vmatpush1.xpose.msra.mxu0 0.0
        %909 = vmatprep.subr.mxu0 0.0
        %910 = vmatpush1.xpose.msra.mxu0 0.0
        %911 = vmatprep.subr.mxu0 0.0
        %912 = vmatpush1.xpose.msra.mxu0 0.0
        %913 = vmatprep.subr.mxu0 0.0
        %914 = vmatpush1.xpose.msra.mxu0 0.0
        %915 = vmatprep.subr.mxu0 0.0
        %916 = vmatpush1.xpose.msra.mxu0 0.0
        %917 = vmatprep.subr.mxu0 0.0
        %918 = vmatpush1.xpose.msra.mxu0 0.0
        %919 = vmatprep.subr.mxu0 0.0
        %920 = vmatpush1.xpose.msra.mxu0 0.0
        %921 = vmatprep.subr.mxu0 0.0
        %922 = vmatpush1.xpose.msra.mxu0 0.0
        %923 = vmatprep.subr.mxu0 0.0
        %924 = vmatpush1.xpose.msra.mxu0 0.0
        %925 = vmatprep.subr.mxu0 0.0
        %926 = vmatpush1.xpose.msra.mxu0 0.0
        %927 = vmatprep.subr.mxu0 0.0
        %928 = vmatpush1.xpose.msra.mxu0 0.0
        %929 = vmatprep.subr.mxu0 0.0
        %930 = vmatpush1.xpose.msra.mxu0 0.0
        %931 = vmatprep.subr.mxu0 0.0
        %932 = vmatpush1.xpose.msra.mxu0 0.0
        %933 = vmatprep.subr.mxu0 0.0
        %934 = vmatpush1.xpose.msra.mxu0 0.0
        %935 = vmatprep.subr.mxu0 0.0
        %936 = vmatpush1.xpose.msra.mxu0 0.0
        %937 = vmatprep.subr.mxu0 0.0
        %938 = vmatpush1.xpose.msra.mxu0 0.0
        %939 = vmatprep.subr.mxu0 0.0
        %940 = vmatpush1.xpose.msra.mxu0 0.0
        %941 = vmatprep.subr.mxu0 0.0
        %942 = vmatpush1.xpose.msra.mxu0 0.0
        %943 = vmatprep.subr.mxu0 0.0
        %944 = vmatpush1.xpose.msra.mxu0 0.0
        %945 = vmatprep.subr.mxu0 0.0
        %946 = vmatpush1.xpose.msra.mxu0 0.0
        %947 = vmatprep.subr.mxu0 0.0
        %948 = vmatpush1.xpose.msra.mxu0 0.0
        %949 = vmatprep.subr.mxu0 0.0
        %950 = vmatpush1.xpose.msra.mxu0 0.0
        %951 = vmatprep.subr.mxu0 0.0
        %952 = vmatpush1.xpose.msra.mxu0 0.0
        %953 = vmatprep.subr.mxu0 0.0
        %954 = vmatpush1.xpose.msra.mxu0 0.0
        %955 = vmatprep.mubr.f32.mxu0 0.0
        %956 = vmatmul.mubr.f32.gmra.mrb[0].mxu0 %v886
        %v957 = vpop.f32.mrb[0].mxu0
        %v958 = vadd.f32 0.0, %v957
        %v959 = vpop.f32.mrb[0].mxu0
        %960 = vdwg.mxu0
        %v961 = vmul.f32 %v958, 0.0625
        %vm962 = vcmask 64512
        %v963 = vsel %vm962, %v961, -inf
        %964 = vmax.xlane.f32.xlu0 %v963
        %v965 = vpop.xlane.xlu0 %964
        %v966 = vsub.f32 %v961, %v965
        %v967 = vmul.f32 %v966, 1.442695
        %v968 = vpow.pop %v967
        %v969 = vsel %vm962, %v968, 0.0
        %970 = vadd.xlane.f32.xlu0 %v969
        %v971 = vpop.xlane.xlu0 %970
        %v972 = vrcp.pop %v971
        %v973 = vmul.f32 %v968, %v972
        %v975 = vsel %vm962, %v973, 0
        %977 = vmatprep.subr.mxu0 0.0
        %978 = vmatpush1.msra.mxu0 %v882
        %979 = vmatprep.subr.mxu0 0.0
        %980 = vmatpush1.msra.mxu0 0.0
        %981 = vmatprep.subr.mxu0 0.0
        %982 = vmatpush1.msra.mxu0 0.0
        %983 = vmatprep.subr.mxu0 0.0
        %984 = vmatpush1.msra.mxu0 0.0
        %985 = vmatprep.subr.mxu0 0.0
        %986 = vmatpush1.msra.mxu0 0.0
        %987 = vmatprep.subr.mxu0 0.0
        %988 = vmatpush1.msra.mxu0 0.0
        %989 = vmatprep.subr.mxu0 0.0
        %990 = vmatpush1.msra.mxu0 0.0
        %991 = vmatprep.subr.mxu0 0.0
        %992 = vmatpush1.msra.mxu0 0.0
        %993 = vmatprep.subr.mxu0 0.0
        %994 = vmatpush1.msra.mxu0 0.0
        %995 = vmatprep.subr.mxu0 0.0
        %996 = vmatpush1.msra.mxu0 0.0
        %997 = vmatprep.subr.mxu0 0.0
        %998 = vmatpush1.msra.mxu0 0.0
        %999 = vmatprep.subr.mxu0 0.0
        %1000 = vmatpush1.msra.mxu0 0.0
        %1001 = vmatprep.subr.mxu0 0.0
        %1002 = vmatpush1.msra.mxu0 0.0
        %1003 = vmatprep.subr.mxu0 0.0
        %1004 = vmatpush1.msra.mxu0 0.0
        %1005 = vmatprep.subr.mxu0 0.0
        %1006 = vmatpush1.msra.mxu0 0.0
        %1007 = vmatprep.subr.mxu0 0.0
        %1008 = vmatpush1.msra.mxu0 0.0
        %1009 = vmatprep.subr.mxu0 0.0
        %1010 = vmatpush1.msra.mxu0 0.0
        %1011 = vmatprep.subr.mxu0 0.0
        %1012 = vmatpush1.msra.mxu0 0.0
        %1013 = vmatprep.subr.mxu0 0.0
        %1014 = vmatpush1.msra.mxu0 0.0
        %1015 = vmatprep.subr.mxu0 0.0
        %1016 = vmatpush1.msra.mxu0 0.0
        %1017 = vmatprep.subr.mxu0 0.0
        %1018 = vmatpush1.msra.mxu0 0.0
        %1019 = vmatprep.subr.mxu0 0.0
        %1020 = vmatpush1.msra.mxu0 0.0
        %1021 = vmatprep.subr.mxu0 0.0
        %1022 = vmatpush1.msra.mxu0 0.0
        %1023 = vmatprep.subr.mxu0 0.0
        %1024 = vmatpush1.msra.mxu0 0.0
        %1025 = vmatprep.subr.mxu0 0.0
        %1026 = vmatpush1.msra.mxu0 0.0
        %1027 = vmatprep.subr.mxu0 0.0
        %1028 = vmatpush1.msra.mxu0 0.0
        %1029 = vmatprep.subr.mxu0 0.0
        %1030 = vmatpush1.msra.mxu0 0.0
        %1031 = vmatprep.subr.mxu0 0.0
        %1032 = vmatpush1.msra.mxu0 0.0
        %1033 = vmatprep.subr.mxu0 0.0
        %1034 = vmatpush1.msra.mxu0 0.0
        %1035 = vmatprep.subr.mxu0 0.0
        %1036 = vmatpush1.msra.mxu0 0.0
        %1037 = vmatprep.subr.mxu0 0.0
        %1038 = vmatpush1.msra.mxu0 0.0
        %1039 = vmatprep.subr.mxu0 0.0
        %1040 = vmatpush1.msra.mxu0 0.0
        %1041 = vmatprep.mubr.f32.mxu0 0.0
        %1042 = vmatmul.mubr.f32.gmra.mrb[0].mxu0 %v975
        %v1043 = vpop.f32.mrb[0].mxu0
        %v1044 = vadd.f32 0.0, %v1043
        %v1045 = vpop.f32.mrb[0].mxu0
        %1046 = vdwg.mxu0
        %1047 = vst.msk [vmem:[#allocation4] sm:$0xff] %vm884, %v1044
        %1048 = vrot.lane.b32.xlu0 %v876, 96
        %v1049 = vpop.permute.xlu0 %1048
        %1050 = vrot.lane.b32.xlu0 %v880, 96
        %v1051 = vpop.permute.xlu0 %1050
        %v1052 = vsel %vm884, %v1049, 0
        %v1054 = vsel %vm884, %v1051, 0
        %1056 = vmatprep.subr.mxu0 0.0
        %1057 = vmatpush1.xpose.msra.mxu0 %v1054
        %1058 = vmatprep.subr.mxu0 0.0
        %1059 = vmatpush1.xpose.msra.mxu0 0.0
        %1060 = vmatprep.subr.mxu0 0.0
        %1061 = vmatpush1.xpose.msra.mxu0 0.0
        %1062 = vmatprep.subr.mxu0 0.0
        %1063 = vmatpush1.xpose.msra.mxu0 0.0
        %1064 = vmatprep.subr.mxu0 0.0
        %1065 = vmatpush1.xpose.msra.mxu0 0.0
        %1066 = vmatprep.subr.mxu0 0.0
        %1067 = vmatpush1.xpose.msra.mxu0 0.0
        %1068 = vmatprep.subr.mxu0 0.0
        %1069 = vmatpush1.xpose.msra.mxu0 0.0
        %1070 = vmatprep.subr.mxu0 0.0
        %1071 = vmatpush1.xpose.msra.mxu0 0.0
        %1072 = vmatprep.subr.mxu0 0.0
        %1073 = vmatpush1.xpose.msra.mxu0 0.0
        %1074 = vmatprep.subr.mxu0 0.0
        %1075 = vmatpush1.xpose.msra.mxu0 0.0
        %1076 = vmatprep.subr.mxu0 0.0
        %1077 = vmatpush1.xpose.msra.mxu0 0.0
        %1078 = vmatprep.subr.mxu0 0.0
        %1079 = vmatpush1.xpose.msra.mxu0 0.0
        %1080 = vmatprep.subr.mxu0 0.0
        %1081 = vmatpush1.xpose.msra.mxu0 0.0
        %1082 = vmatprep.subr.mxu0 0.0
        %1083 = vmatpush1.xpose.msra.mxu0 0.0
        %1084 = vmatprep.subr.mxu0 0.0
        %1085 = vmatpush1.xpose.msra.mxu0 0.0
        %1086 = vmatprep.subr.mxu0 0.0
        %1087 = vmatpush1.xpose.msra.mxu0 0.0
        %1088 = vmatprep.subr.mxu0 0.0
        %1089 = vmatpush1.xpose.msra.mxu0 0.0
        %1090 = vmatprep.subr.mxu0 0.0
        %1091 = vmatpush1.xpose.msra.mxu0 0.0
        %1092 = vmatprep.subr.mxu0 0.0
        %1093 = vmatpush1.xpose.msra.mxu0 0.0
        %1094 = vmatprep.subr.mxu0 0.0
        %1095 = vmatpush1.xpose.msra.mxu0 0.0
        %1096 = vmatprep.subr.mxu0 0.0
        %1097 = vmatpush1.xpose.msra.mxu0 0.0
        %1098 = vmatprep.subr.mxu0 0.0
        %1099 = vmatpush1.xpose.msra.mxu0 0.0
        %1100 = vmatprep.subr.mxu0 0.0
        %1101 = vmatpush1.xpose.msra.mxu0 0.0
        %1102 = vmatprep.subr.mxu0 0.0
        %1103 = vmatpush1.xpose.msra.mxu0 0.0
        %1104 = vmatprep.subr.mxu0 0.0
        %1105 = vmatpush1.xpose.msra.mxu0 0.0
        %1106 = vmatprep.subr.mxu0 0.0
        %1107 = vmatpush1.xpose.msra.mxu0 0.0
        %1108 = vmatprep.subr.mxu0 0.0
        %1109 = vmatpush1.xpose.msra.mxu0 0.0
        %1110 = vmatprep.subr.mxu0 0.0
        %1111 = vmatpush1.xpose.msra.mxu0 0.0
        %1112 = vmatprep.subr.mxu0 0.0
        %1113 = vmatpush1.xpose.msra.mxu0 0.0
        %1114 = vmatprep.subr.mxu0 0.0
        %1115 = vmatpush1.xpose.msra.mxu0 0.0
        %1116 = vmatprep.subr.mxu0 0.0
        %1117 = vmatpush1.xpose.msra.mxu0 0.0
        %1118 = vmatprep.subr.mxu0 0.0
        %1119 = vmatpush1.xpose.msra.mxu0 0.0
        %1120 = vmatprep.mubr.f32.mxu0 0.0
        %1121 = vmatmul.mubr.f32.gmra.mrb[0].mxu0 %v1052
        %v1122 = vpop.f32.mrb[0].mxu0
        %v1123 = vadd.f32 0.0, %v1122
        %v1124 = vpop.f32.mrb[0].mxu0
        %1125 = vdwg.mxu0
        %v1126 = vmul.f32 %v1123, 0.0625
        %v1127 = vsel %vm962, %v1126, -inf
        %1128 = vmax.xlane.f32.xlu0 %v1127
        %v1129 = vpop.xlane.xlu0 %1128
        %v1130 = vsub.f32 %v1126, %v1129
        %v1131 = vmul.f32 %v1130, 1.442695
        %v1132 = vpow.pop %v1131
        %v1133 = vsel %vm962, %v1132, 0.0
        %1134 = vadd.xlane.f32.xlu0 %v1133
        %v1135 = vpop.xlane.xlu0 %1134
        %v1136 = vrcp.pop %v1135
        %v1137 = vmul.f32 %v1132, %v1136
        %1139 = vrot.lane.b32.xlu0 %v882, 96
        %v1140 = vpop.permute.xlu0 %1139
        %v1143 = vsel %vm962, %v1137, 0
        %1145 = vmatprep.subr.mxu0 0.0
        %1146 = vmatpush1.msra.mxu0 %v1140
        %1147 = vmatprep.subr.mxu0 0.0
        %1148 = vmatpush1.msra.mxu0 0.0
        %1149 = vmatprep.subr.mxu0 0.0
        %1150 = vmatpush1.msra.mxu0 0.0
        %1151 = vmatprep.subr.mxu0 0.0
        %1152 = vmatpush1.msra.mxu0 0.0
        %1153 = vmatprep.subr.mxu0 0.0
        %1154 = vmatpush1.msra.mxu0 0.0
        %1155 = vmatprep.subr.mxu0 0.0
        %1156 = vmatpush1.msra.mxu0 0.0
        %1157 = vmatprep.subr.mxu0 0.0
        %1158 = vmatpush1.msra.mxu0 0.0
        %1159 = vmatprep.subr.mxu0 0.0
        %1160 = vmatpush1.msra.mxu0 0.0
        %1161 = vmatprep.subr.mxu0 0.0
        %1162 = vmatpush1.msra.mxu0 0.0
        %1163 = vmatprep.subr.mxu0 0.0
        %1164 = vmatpush1.msra.mxu0 0.0
        %1165 = vmatprep.subr.mxu0 0.0
        %1166 = vmatpush1.msra.mxu0 0.0
        %1167 = vmatprep.subr.mxu0 0.0
        %1168 = vmatpush1.msra.mxu0 0.0
        %1169 = vmatprep.subr.mxu0 0.0
        %1170 = vmatpush1.msra.mxu0 0.0
        %1171 = vmatprep.subr.mxu0 0.0
        %1172 = vmatpush1.msra.mxu0 0.0
        %1173 = vmatprep.subr.mxu0 0.0
        %1174 = vmatpush1.msra.mxu0 0.0
        %1175 = vmatprep.subr.mxu0 0.0
        %1176 = vmatpush1.msra.mxu0 0.0
        %1177 = vmatprep.subr.mxu0 0.0
        %1178 = vmatpush1.msra.mxu0 0.0
        %1179 = vmatprep.subr.mxu0 0.0
        %1180 = vmatpush1.msra.mxu0 0.0
        %1181 = vmatprep.subr.mxu0 0.0
        %1182 = vmatpush1.msra.mxu0 0.0
        %1183 = vmatprep.subr.mxu0 0.0
        %1184 = vmatpush1.msra.mxu0 0.0
        %1185 = vmatprep.subr.mxu0 0.0
        %1186 = vmatpush1.msra.mxu0 0.0
        %1187 = vmatprep.subr.mxu0 0.0
        %1188 = vmatpush1.msra.mxu0 0.0
        %1189 = vmatprep.subr.mxu0 0.0
        %1190 = vmatpush1.msra.mxu0 0.0
        %1191 = vmatprep.subr.mxu0 0.0
        %1192 = vmatpush1.msra.mxu0 0.0
        %1193 = vmatprep.subr.mxu0 0.0
        %1194 = vmatpush1.msra.mxu0 0.0
        %1195 = vmatprep.subr.mxu0 0.0
        %1196 = vmatpush1.msra.mxu0 0.0
        %1197 = vmatprep.subr.mxu0 0.0
        %1198 = vmatpush1.msra.mxu0 0.0
        %1199 = vmatprep.subr.mxu0 0.0
        %1200 = vmatpush1.msra.mxu0 0.0
        %1201 = vmatprep.subr.mxu0 0.0
        %1202 = vmatpush1.msra.mxu0 0.0
        %1203 = vmatprep.subr.mxu0 0.0
        %1204 = vmatpush1.msra.mxu0 0.0
        %1205 = vmatprep.subr.mxu0 0.0
        %1206 = vmatpush1.msra.mxu0 0.0
        %1207 = vmatprep.subr.mxu0 0.0
        %1208 = vmatpush1.msra.mxu0 0.0
        %1209 = vmatprep.mubr.f32.mxu0 0.0
        %1210 = vmatmul.mubr.f32.gmra.mrb[0].mxu0 %v1143
        %v1211 = vpop.f32.mrb[0].mxu0
        %v1212 = vadd.f32 0.0, %v1211
        %v1213 = vpop.f32.mrb[0].mxu0
        %1214 = vdwg.mxu0
        %1216 = vrot.lane.b32.xlu0 %v1212, 32
        %v1217 = vpop.permute.xlu0 %1216
        %vm1219 = vcmask 523520
        %1220 = vst.msk [vmem:[#allocation4] sm:$0xff] %vm1219, %v1217
        %1221 = vrot.lane.b32.xlu0 %v876, 64
        %v1222 = vpop.permute.xlu0 %1221
        %1223 = vrot.lane.b32.xlu0 %v880, 64
        %v1224 = vpop.permute.xlu0 %1223
        %v1225 = vsel %vm884, %v1222, 0
        %v1227 = vsel %vm884, %v1224, 0
        %1229 = vmatprep.subr.mxu0 0.0
        %1230 = vmatpush1.xpose.msra.mxu0 %v1227
        %1231 = vmatprep.subr.mxu0 0.0
        %1232 = vmatpush1.xpose.msra.mxu0 0.0
        %1233 = vmatprep.subr.mxu0 0.0
        %1234 = vmatpush1.xpose.msra.mxu0 0.0
        %1235 = vmatprep.subr.mxu0 0.0
        %1236 = vmatpush1.xpose.msra.mxu0 0.0
        %1237 = vmatprep.subr.mxu0 0.0
        %1238 = vmatpush1.xpose.msra.mxu0 0.0
        %1239 = vmatprep.subr.mxu0 0.0
        %1240 = vmatpush1.xpose.msra.mxu0 0.0
        %1241 = vmatprep.subr.mxu0 0.0
        %1242 = vmatpush1.xpose.msra.mxu0 0.0
        %1243 = vmatprep.subr.mxu0 0.0
        %1244 = vmatpush1.xpose.msra.mxu0 0.0
        %1245 = vmatprep.subr.mxu0 0.0
        %1246 = vmatpush1.xpose.msra.mxu0 0.0
        %1247 = vmatprep.subr.mxu0 0.0
        %1248 = vmatpush1.xpose.msra.mxu0 0.0
        %1249 = vmatprep.subr.mxu0 0.0
        %1250 = vmatpush1.xpose.msra.mxu0 0.0
        %1251 = vmatprep.subr.mxu0 0.0
        %1252 = vmatpush1.xpose.msra.mxu0 0.0
        %1253 = vmatprep.subr.mxu0 0.0
        %1254 = vmatpush1.xpose.msra.mxu0 0.0
        %1255 = vmatprep.subr.mxu0 0.0
        %1256 = vmatpush1.xpose.msra.mxu0 0.0
        %1257 = vmatprep.subr.mxu0 0.0
        %1258 = vmatpush1.xpose.msra.mxu0 0.0
        %1259 = vmatprep.subr.mxu0 0.0
        %1260 = vmatpush1.xpose.msra.mxu0 0.0
        %1261 = vmatprep.subr.mxu0 0.0
        %1262 = vmatpush1.xpose.msra.mxu0 0.0
        %1263 = vmatprep.subr.mxu0 0.0
        %1264 = vmatpush1.xpose.msra.mxu0 0.0
        %1265 = vmatprep.subr.mxu0 0.0
        %1266 = vmatpush1.xpose.msra.mxu0 0.0
        %1267 = vmatprep.subr.mxu0 0.0
        %1268 = vmatpush1.xpose.msra.mxu0 0.0
        %1269 = vmatprep.subr.mxu0 0.0
        %1270 = vmatpush1.xpose.msra.mxu0 0.0
        %1271 = vmatprep.subr.mxu0 0.0
        %1272 = vmatpush1.xpose.msra.mxu0 0.0
        %1273 = vmatprep.subr.mxu0 0.0
        %1274 = vmatpush1.xpose.msra.mxu0 0.0
        %1275 = vmatprep.subr.mxu0 0.0
        %1276 = vmatpush1.xpose.msra.mxu0 0.0
        %1277 = vmatprep.subr.mxu0 0.0
        %1278 = vmatpush1.xpose.msra.mxu0 0.0
        %1279 = vmatprep.subr.mxu0 0.0
        %1280 = vmatpush1.xpose.msra.mxu0 0.0
        %1281 = vmatprep.subr.mxu0 0.0
        %1282 = vmatpush1.xpose.msra.mxu0 0.0
        %1283 = vmatprep.subr.mxu0 0.0
        %1284 = vmatpush1.xpose.msra.mxu0 0.0
        %1285 = vmatprep.subr.mxu0 0.0
        %1286 = vmatpush1.xpose.msra.mxu0 0.0
        %1287 = vmatprep.subr.mxu0 0.0
        %1288 = vmatpush1.xpose.msra.mxu0 0.0
        %1289 = vmatprep.subr.mxu0 0.0
        %1290 = vmatpush1.xpose.msra.mxu0 0.0
        %1291 = vmatprep.subr.mxu0 0.0
        %1292 = vmatpush1.xpose.msra.mxu0 0.0
        %1293 = vmatprep.mubr.f32.mxu0 0.0
        %1294 = vmatmul.mubr.f32.gmra.mrb[0].mxu0 %v1225
        %v1295 = vpop.f32.mrb[0].mxu0
        %v1296 = vadd.f32 0.0, %v1295
        %v1297 = vpop.f32.mrb[0].mxu0
        %1298 = vdwg.mxu0
        %v1299 = vmul.f32 %v1296, 0.0625
        %v1300 = vsel %vm962, %v1299, -inf
        %1301 = vmax.xlane.f32.xlu0 %v1300
        %v1302 = vpop.xlane.xlu0 %1301
        %v1303 = vsub.f32 %v1299, %v1302
        %v1304 = vmul.f32 %v1303, 1.442695
        %v1305 = vpow.pop %v1304
        %v1306 = vsel %vm962, %v1305, 0.0
        %1307 = vadd.xlane.f32.xlu0 %v1306
        %v1308 = vpop.xlane.xlu0 %1307
        %v1309 = vrcp.pop %v1308
        %v1310 = vmul.f32 %v1305, %v1309
        %1311 = vrot.lane.b32.xlu0 %v882, 64
        %v1312 = vpop.permute.xlu0 %1311
        %v1315 = vsel %vm962, %v1310, 0
        %1317 = vmatprep.subr.mxu0 0.0
        %1318 = vmatpush1.msra.mxu0 %v1312
        %1319 = vmatprep.subr.mxu0 0.0
        %1320 = vmatpush1.msra.mxu0 0.0
        %1321 = vmatprep.subr.mxu0 0.0
        %1322 = vmatpush1.msra.mxu0 0.0
        %1323 = vmatprep.subr.mxu0 0.0
        %1324 = vmatpush1.msra.mxu0 0.0
        %1325 = vmatprep.subr.mxu0 0.0
        %1326 = vmatpush1.msra.mxu0 0.0
        %1327 = vmatprep.subr.mxu0 0.0
        %1328 = vmatpush1.msra.mxu0 0.0
        %1329 = vmatprep.subr.mxu0 0.0
        %1330 = vmatpush1.msra.mxu0 0.0
        %1331 = vmatprep.subr.mxu0 0.0
        %1332 = vmatpush1.msra.mxu0 0.0
        %1333 = vmatprep.subr.mxu0 0.0
        %1334 = vmatpush1.msra.mxu0 0.0
        %1335 = vmatprep.subr.mxu0 0.0
        %1336 = vmatpush1.msra.mxu0 0.0
        %1337 = vmatprep.subr.mxu0 0.0
        %1338 = vmatpush1.msra.mxu0 0.0
        %1339 = vmatprep.subr.mxu0 0.0
        %1340 = vmatpush1.msra.mxu0 0.0
        %1341 = vmatprep.subr.mxu0 0.0
        %1342 = vmatpush1.msra.mxu0 0.0
        %1343 = vmatprep.subr.mxu0 0.0
        %1344 = vmatpush1.msra.mxu0 0.0
        %1345 = vmatprep.subr.mxu0 0.0
        %1346 = vmatpush1.msra.mxu0 0.0
        %1347 = vmatprep.subr.mxu0 0.0
        %1348 = vmatpush1.msra.mxu0 0.0
        %1349 = vmatprep.subr.mxu0 0.0
        %1350 = vmatpush1.msra.mxu0 0.0
        %1351 = vmatprep.subr.mxu0 0.0
        %1352 = vmatpush1.msra.mxu0 0.0
        %1353 = vmatprep.subr.mxu0 0.0
        %1354 = vmatpush1.msra.mxu0 0.0
        %1355 = vmatprep.subr.mxu0 0.0
        %1356 = vmatpush1.msra.mxu0 0.0
        %1357 = vmatprep.subr.mxu0 0.0
        %1358 = vmatpush1.msra.mxu0 0.0
        %1359 = vmatprep.subr.mxu0 0.0
        %1360 = vmatpush1.msra.mxu0 0.0
        %1361 = vmatprep.subr.mxu0 0.0
        %1362 = vmatpush1.msra.mxu0 0.0
        %1363 = vmatprep.subr.mxu0 0.0
        %1364 = vmatpush1.msra.mxu0 0.0
        %1365 = vmatprep.subr.mxu0 0.0
        %1366 = vmatpush1.msra.mxu0 0.0
        %1367 = vmatprep.subr.mxu0 0.0
        %1368 = vmatpush1.msra.mxu0 0.0
        %1369 = vmatprep.subr.mxu0 0.0
        %1370 = vmatpush1.msra.mxu0 0.0
        %1371 = vmatprep.subr.mxu0 0.0
        %1372 = vmatpush1.msra.mxu0 0.0
        %1373 = vmatprep.subr.mxu0 0.0
        %1374 = vmatpush1.msra.mxu0 0.0
        %1375 = vmatprep.subr.mxu0 0.0
        %1376 = vmatpush1.msra.mxu0 0.0
        %1377 = vmatprep.subr.mxu0 0.0
        %1378 = vmatpush1.msra.mxu0 0.0
        %1379 = vmatprep.subr.mxu0 0.0
        %1380 = vmatpush1.msra.mxu0 0.0
        %1381 = vmatprep.mubr.f32.mxu0 0.0
        %1382 = vmatmul.mubr.f32.gmra.mrb[0].mxu0 %v1315
        %v1383 = vpop.f32.mrb[0].mxu0
        %v1384 = vadd.f32 0.0, %v1383
        %v1385 = vpop.f32.mrb[0].mxu0
        %1386 = vdwg.mxu0
        %1388 = vrot.lane.b32.xlu0 %v1384, 64
        %v1389 = vpop.permute.xlu0 %1388
        %vm1391 = vcmask 785920
        %1392 = vst.msk [vmem:[#allocation4] sm:$0xff] %vm1391, %v1389
        %1393 = vrot.lane.b32.xlu0 %v876, 32
        %v1394 = vpop.permute.xlu0 %1393
        %1395 = vrot.lane.b32.xlu0 %v880, 32
        %v1396 = vpop.permute.xlu0 %1395
        %v1397 = vsel %vm884, %v1394, 0
        %v1399 = vsel %vm884, %v1396, 0
        %1401 = vmatprep.subr.mxu0 0.0
        %1402 = vmatpush1.xpose.msra.mxu0 %v1399
        %1403 = vmatprep.subr.mxu0 0.0
        %1404 = vmatpush1.xpose.msra.mxu0 0.0
        %1405 = vmatprep.subr.mxu0 0.0
        %1406 = vmatpush1.xpose.msra.mxu0 0.0
        %1407 = vmatprep.subr.mxu0 0.0
        %1408 = vmatpush1.xpose.msra.mxu0 0.0
        %1409 = vmatprep.subr.mxu0 0.0
        %1410 = vmatpush1.xpose.msra.mxu0 0.0
        %1411 = vmatprep.subr.mxu0 0.0
        %1412 = vmatpush1.xpose.msra.mxu0 0.0
        %1413 = vmatprep.subr.mxu0 0.0
        %1414 = vmatpush1.xpose.msra.mxu0 0.0
        %1415 = vmatprep.subr.mxu0 0.0
        %1416 = vmatpush1.xpose.msra.mxu0 0.0
        %1417 = vmatprep.subr.mxu0 0.0
        %1418 = vmatpush1.xpose.msra.mxu0 0.0
        %1419 = vmatprep.subr.mxu0 0.0
        %1420 = vmatpush1.xpose.msra.mxu0 0.0
        %1421 = vmatprep.subr.mxu0 0.0
        %1422 = vmatpush1.xpose.msra.mxu0 0.0
        %1423 = vmatprep.subr.mxu0 0.0
        %1424 = vmatpush1.xpose.msra.mxu0 0.0
        %1425 = vmatprep.subr.mxu0 0.0
        %1426 = vmatpush1.xpose.msra.mxu0 0.0
        %1427 = vmatprep.subr.mxu0 0.0
        %1428 = vmatpush1.xpose.msra.mxu0 0.0
        %1429 = vmatprep.subr.mxu0 0.0
        %1430 = vmatpush1.xpose.msra.mxu0 0.0
        %1431 = vmatprep.subr.mxu0 0.0
        %1432 = vmatpush1.xpose.msra.mxu0 0.0
        %1433 = vmatprep.subr.mxu0 0.0
        %1434 = vmatpush1.xpose.msra.mxu0 0.0
        %1435 = vmatprep.subr.mxu0 0.0
        %1436 = vmatpush1.xpose.msra.mxu0 0.0
        %1437 = vmatprep.subr.mxu0 0.0
        %1438 = vmatpush1.xpose.msra.mxu0 0.0
        %1439 = vmatprep.subr.mxu0 0.0
        %1440 = vmatpush1.xpose.msra.mxu0 0.0
        %1441 = vmatprep.subr.mxu0 0.0
        %1442 = vmatpush1.xpose.msra.mxu0 0.0
        %1443 = vmatprep.subr.mxu0 0.0
        %1444 = vmatpush1.xpose.msra.mxu0 0.0
        %1445 = vmatprep.subr.mxu0 0.0
        %1446 = vmatpush1.xpose.msra.mxu0 0.0
        %1447 = vmatprep.subr.mxu0 0.0
        %1448 = vmatpush1.xpose.msra.mxu0 0.0
        %1449 = vmatprep.subr.mxu0 0.0
        %1450 = vmatpush1.xpose.msra.mxu0 0.0
        %1451 = vmatprep.subr.mxu0 0.0
        %1452 = vmatpush1.xpose.msra.mxu0 0.0
        %1453 = vmatprep.subr.mxu0 0.0
        %1454 = vmatpush1.xpose.msra.mxu0 0.0
        %1455 = vmatprep.subr.mxu0 0.0
        %1456 = vmatpush1.xpose.msra.mxu0 0.0
        %1457 = vmatprep.subr.mxu0 0.0
        %1458 = vmatpush1.xpose.msra.mxu0 0.0
        %1459 = vmatprep.subr.mxu0 0.0
        %1460 = vmatpush1.xpose.msra.mxu0 0.0
        %1461 = vmatprep.subr.mxu0 0.0
        %1462 = vmatpush1.xpose.msra.mxu0 0.0
        %1463 = vmatprep.subr.mxu0 0.0
        %1464 = vmatpush1.xpose.msra.mxu0 0.0
        %1465 = vmatprep.mubr.f32.mxu0 0.0
        %1466 = vmatmul.mubr.f32.gmra.mrb[0].mxu0 %v1397
        %v1467 = vpop.f32.mrb[0].mxu0
        %v1468 = vadd.f32 0.0, %v1467
        %v1469 = vpop.f32.mrb[0].mxu0
        %1470 = vdwg.mxu0
        %v1471 = vmul.f32 %v1468, 0.0625
        %v1472 = vsel %vm962, %v1471, -inf
        %1473 = vmax.xlane.f32.xlu0 %v1472
        %v1474 = vpop.xlane.xlu0 %1473
        %v1475 = vsub.f32 %v1471, %v1474
        %v1476 = vmul.f32 %v1475, 1.442695
        %v1477 = vpow.pop %v1476
        %v1478 = vsel %vm962, %v1477, 0.0
        %1479 = vadd.xlane.f32.xlu0 %v1478
        %v1480 = vpop.xlane.xlu0 %1479
        %v1481 = vrcp.pop %v1480
        %v1482 = vmul.f32 %v1477, %v1481
        %1483 = vrot.lane.b32.xlu0 %v882, 32
        %v1484 = vpop.permute.xlu0 %1483
        %v1487 = vsel %vm962, %v1482, 0
        %1489 = vmatprep.subr.mxu0 0.0
        %1490 = vmatpush1.msra.mxu0 %v1484
        %1491 = vmatprep.subr.mxu0 0.0
        %1492 = vmatpush1.msra.mxu0 0.0
        %1493 = vmatprep.subr.mxu0 0.0
        %1494 = vmatpush1.msra.mxu0 0.0
        %1495 = vmatprep.subr.mxu0 0.0
        %1496 = vmatpush1.msra.mxu0 0.0
        %1497 = vmatprep.subr.mxu0 0.0
        %1498 = vmatpush1.msra.mxu0 0.0
        %1499 = vmatprep.subr.mxu0 0.0
        %1500 = vmatpush1.msra.mxu0 0.0
        %1501 = vmatprep.subr.mxu0 0.0
        %1502 = vmatpush1.msra.mxu0 0.0
        %1503 = vmatprep.subr.mxu0 0.0
        %1504 = vmatpush1.msra.mxu0 0.0
        %1505 = vmatprep.subr.mxu0 0.0
        %1506 = vmatpush1.msra.mxu0 0.0
        %1507 = vmatprep.subr.mxu0 0.0
        %1508 = vmatpush1.msra.mxu0 0.0
        %1509 = vmatprep.subr.mxu0 0.0
        %1510 = vmatpush1.msra.mxu0 0.0
        %1511 = vmatprep.subr.mxu0 0.0
        %1512 = vmatpush1.msra.mxu0 0.0
        %1513 = vmatprep.subr.mxu0 0.0
        %1514 = vmatpush1.msra.mxu0 0.0
        %1515 = vmatprep.subr.mxu0 0.0
        %1516 = vmatpush1.msra.mxu0 0.0
        %1517 = vmatprep.subr.mxu0 0.0
        %1518 = vmatpush1.msra.mxu0 0.0
        %1519 = vmatprep.subr.mxu0 0.0
        %1520 = vmatpush1.msra.mxu0 0.0
        %1521 = vmatprep.subr.mxu0 0.0
        %1522 = vmatpush1.msra.mxu0 0.0
        %1523 = vmatprep.subr.mxu0 0.0
        %1524 = vmatpush1.msra.mxu0 0.0
        %1525 = vmatprep.subr.mxu0 0.0
        %1526 = vmatpush1.msra.mxu0 0.0
        %1527 = vmatprep.subr.mxu0 0.0
        %1528 = vmatpush1.msra.mxu0 0.0
        %1529 = vmatprep.subr.mxu0 0.0
        %1530 = vmatpush1.msra.mxu0 0.0
        %1531 = vmatprep.subr.mxu0 0.0
        %1532 = vmatpush1.msra.mxu0 0.0
        %1533 = vmatprep.subr.mxu0 0.0
        %1534 = vmatpush1.msra.mxu0 0.0
        %1535 = vmatprep.subr.mxu0 0.0
        %1536 = vmatpush1.msra.mxu0 0.0
        %1537 = vmatprep.subr.mxu0 0.0
        %1538 = vmatpush1.msra.mxu0 0.0
        %1539 = vmatprep.subr.mxu0 0.0
        %1540 = vmatpush1.msra.mxu0 0.0
        %1541 = vmatprep.subr.mxu0 0.0
        %1542 = vmatpush1.msra.mxu0 0.0
        %1543 = vmatprep.subr.mxu0 0.0
        %1544 = vmatpush1.msra.mxu0 0.0
        %1545 = vmatprep.subr.mxu0 0.0
        %1546 = vmatpush1.msra.mxu0 0.0
        %1547 = vmatprep.subr.mxu0 0.0
        %1548 = vmatpush1.msra.mxu0 0.0
        %1549 = vmatprep.subr.mxu0 0.0
        %1550 = vmatpush1.msra.mxu0 0.0
        %1551 = vmatprep.subr.mxu0 0.0
        %1552 = vmatpush1.msra.mxu0 0.0
        %1553 = vmatprep.mubr.f32.mxu0 0.0
        %1554 = vmatmul.mubr.f32.gmra.mrb[0].mxu0 %v1487
        %v1555 = vpop.f32.mrb[0].mxu0
        %v1556 = vadd.f32 0.0, %v1555
        %v1557 = vpop.f32.mrb[0].mxu0
        %1558 = vdwg.mxu0
        %1560 = vrot.lane.b32.xlu0 %v1556, 96
        %v1561 = vpop.permute.xlu0 %1560
        %vm1563 = vcmask 1048320
        %1564 = vst.msk [vmem:[#allocation4] sm:$0xff] %vm1563, %v1561
        %v1566 = vsel %vm884, %v878, 0
        %v1569 = vsel %vm884, %v881, 0
        %1571 = vmatprep.subr.mxu0 0.0
        %1572 = vmatpush1.xpose.msra.mxu0 %v1569
        %1573 = vmatprep.subr.mxu0 0.0
        %1574 = vmatpush1.xpose.msra.mxu0 0.0
        %1575 = vmatprep.subr.mxu0 0.0
        %1576 = vmatpush1.xpose.msra.mxu0 0.0
        %1577 = vmatprep.subr.mxu0 0.0
        %1578 = vmatpush1.xpose.msra.mxu0 0.0
        %1579 = vmatprep.subr.mxu0 0.0
        %1580 = vmatpush1.xpose.msra.mxu0 0.0
        %1581 = vmatprep.subr.mxu0 0.0
        %1582 = vmatpush1.xpose.msra.mxu0 0.0
        %1583 = vmatprep.subr.mxu0 0.0
        %1584 = vmatpush1.xpose.msra.mxu0 0.0
        %1585 = vmatprep.subr.mxu0 0.0
        %1586 = vmatpush1.xpose.msra.mxu0 0.0
        %1587 = vmatprep.subr.mxu0 0.0
        %1588 = vmatpush1.xpose.msra.mxu0 0.0
        %1589 = vmatprep.subr.mxu0 0.0
        %1590 = vmatpush1.xpose.msra.mxu0 0.0
        %1591 = vmatprep.subr.mxu0 0.0
        %1592 = vmatpush1.xpose.msra.mxu0 0.0
        %1593 = vmatprep.subr.mxu0 0.0
        %1594 = vmatpush1.xpose.msra.mxu0 0.0
        %1595 = vmatprep.subr.mxu0 0.0
        %1596 = vmatpush1.xpose.msra.mxu0 0.0
        %1597 = vmatprep.subr.mxu0 0.0
        %1598 = vmatpush1.xpose.msra.mxu0 0.0
        %1599 = vmatprep.subr.mxu0 0.0
        %1600 = vmatpush1.xpose.msra.mxu0 0.0
        %1601 = vmatprep.subr.mxu0 0.0
        %1602 = vmatpush1.xpose.msra.mxu0 0.0
        %1603 = vmatprep.subr.mxu0 0.0
        %1604 = vmatpush1.xpose.msra.mxu0 0.0
        %1605 = vmatprep.subr.mxu0 0.0
        %1606 = vmatpush1.xpose.msra.mxu0 0.0
        %1607 = vmatprep.subr.mxu0 0.0
        %1608 = vmatpush1.xpose.msra.mxu0 0.0
        %1609 = vmatprep.subr.mxu0 0.0
        %1610 = vmatpush1.xpose.msra.mxu0 0.0
        %1611 = vmatprep.subr.mxu0 0.0
        %1612 = vmatpush1.xpose.msra.mxu0 0.0
        %1613 = vmatprep.subr.mxu0 0.0
        %1614 = vmatpush1.xpose.msra.mxu0 0.0
        %1615 = vmatprep.subr.mxu0 0.0
        %1616 = vmatpush1.xpose.msra.mxu0 0.0
        %1617 = vmatprep.subr.mxu0 0.0
        %1618 = vmatpush1.xpose.msra.mxu0 0.0
        %1619 = vmatprep.subr.mxu0 0.0
        %1620 = vmatpush1.xpose.msra.mxu0 0.0
        %1621 = vmatprep.subr.mxu0 0.0
        %1622 = vmatpush1.xpose.msra.mxu0 0.0
        %1623 = vmatprep.subr.mxu0 0.0
        %1624 = vmatpush1.xpose.msra.mxu0 0.0
        %1625 = vmatprep.subr.mxu0 0.0
        %1626 = vmatpush1.xpose.msra.mxu0 0.0
        %1627 = vmatprep.subr.mxu0 0.0
        %1628 = vmatpush1.xpose.msra.mxu0 0.0
        %1629 = vmatprep.subr.mxu0 0.0
        %1630 = vmatpush1.xpose.msra.mxu0 0.0
        %1631 = vmatprep.subr.mxu0 0.0
        %1632 = vmatpush1.xpose.msra.mxu0 0.0
        %1633 = vmatprep.subr.mxu0 0.0
        %1634 = vmatpush1.xpose.msra.mxu0 0.0
        %1635 = vmatprep.mubr.f32.mxu0 0.0
        %1636 = vmatmul.mubr.f32.gmra.mrb[0].mxu0 %v1566
        %v1637 = vpop.f32.mrb[0].mxu0
        %v1638 = vadd.f32 0.0, %v1637
        %v1639 = vpop.f32.mrb[0].mxu0
        %1640 = vdwg.mxu0
        %v1641 = vmul.f32 %v1638, 0.0625
        %v1642 = vsel %vm962, %v1641, -inf
        %1643 = vmax.xlane.f32.xlu0 %v1642
        %v1644 = vpop.xlane.xlu0 %1643
        %v1645 = vsub.f32 %v1641, %v1644
        %v1646 = vmul.f32 %v1645, 1.442695
        %v1647 = vpow.pop %v1646
        %v1648 = vsel %vm962, %v1647, 0.0
        %1649 = vadd.xlane.f32.xlu0 %v1648
        %v1650 = vpop.xlane.xlu0 %1649
        %v1651 = vrcp.pop %v1650
        %v1652 = vmul.f32 %v1647, %v1651
        %v1654 = vsel %vm962, %v1652, 0
        %1656 = vmatprep.subr.mxu0 0.0
        %1657 = vmatpush1.msra.mxu0 %v883
        %1658 = vmatprep.subr.mxu0 0.0
        %1659 = vmatpush1.msra.mxu0 0.0
        %1660 = vmatprep.subr.mxu0 0.0
        %1661 = vmatpush1.msra.mxu0 0.0
        %1662 = vmatprep.subr.mxu0 0.0
        %1663 = vmatpush1.msra.mxu0 0.0
        %1664 = vmatprep.subr.mxu0 0.0
        %1665 = vmatpush1.msra.mxu0 0.0
        %1666 = vmatprep.subr.mxu0 0.0
        %1667 = vmatpush1.msra.mxu0 0.0
        %1668 = vmatprep.subr.mxu0 0.0
        %1669 = vmatpush1.msra.mxu0 0.0
        %1670 = vmatprep.subr.mxu0 0.0
        %1671 = vmatpush1.msra.mxu0 0.0
        %1672 = vmatprep.subr.mxu0 0.0
        %1673 = vmatpush1.msra.mxu0 0.0
        %1674 = vmatprep.subr.mxu0 0.0
        %1675 = vmatpush1.msra.mxu0 0.0
        %1676 = vmatprep.subr.mxu0 0.0
        %1677 = vmatpush1.msra.mxu0 0.0
        %1678 = vmatprep.subr.mxu0 0.0
        %1679 = vmatpush1.msra.mxu0 0.0
        %1680 = vmatprep.subr.mxu0 0.0
        %1681 = vmatpush1.msra.mxu0 0.0
        %1682 = vmatprep.subr.mxu0 0.0
        %1683 = vmatpush1.msra.mxu0 0.0
        %1684 = vmatprep.subr.mxu0 0.0
        %1685 = vmatpush1.msra.mxu0 0.0
        %1686 = vmatprep.subr.mxu0 0.0
        %1687 = vmatpush1.msra.mxu0 0.0
        %1688 = vmatprep.subr.mxu0 0.0
        %1689 = vmatpush1.msra.mxu0 0.0
        %1690 = vmatprep.subr.mxu0 0.0
        %1691 = vmatpush1.msra.mxu0 0.0
        %1692 = vmatprep.subr.mxu0 0.0
        %1693 = vmatpush1.msra.mxu0 0.0
        %1694 = vmatprep.subr.mxu0 0.0
        %1695 = vmatpush1.msra.mxu0 0.0
        %1696 = vmatprep.subr.mxu0 0.0
        %1697 = vmatpush1.msra.mxu0 0.0
        %1698 = vmatprep.subr.mxu0 0.0
        %1699 = vmatpush1.msra.mxu0 0.0
        %1700 = vmatprep.subr.mxu0 0.0
        %1701 = vmatpush1.msra.mxu0 0.0
        %1702 = vmatprep.subr.mxu0 0.0
        %1703 = vmatpush1.msra.mxu0 0.0
        %1704 = vmatprep.subr.mxu0 0.0
        %1705 = vmatpush1.msra.mxu0 0.0
        %1706 = vmatprep.subr.mxu0 0.0
        %1707 = vmatpush1.msra.mxu0 0.0
        %1708 = vmatprep.subr.mxu0 0.0
        %1709 = vmatpush1.msra.mxu0 0.0
        %1710 = vmatprep.subr.mxu0 0.0
        %1711 = vmatpush1.msra.mxu0 0.0
        %1712 = vmatprep.subr.mxu0 0.0
        %1713 = vmatpush1.msra.mxu0 0.0
        %1714 = vmatprep.subr.mxu0 0.0
        %1715 = vmatpush1.msra.mxu0 0.0
        %1716 = vmatprep.subr.mxu0 0.0
        %1717 = vmatpush1.msra.mxu0 0.0
        %1718 = vmatprep.subr.mxu0 0.0
        %1719 = vmatpush1.msra.mxu0 0.0
        %1720 = vmatprep.mubr.f32.mxu0 0.0
        %1721 = vmatmul.mubr.f32.gmra.mrb[0].mxu0 %v1654
        %v1722 = vpop.f32.mrb[0].mxu0
        %v1723 = vadd.f32 0.0, %v1722
        %v1724 = vpop.f32.mrb[0].mxu0
        %1725 = vdwg.mxu0
        %1726 = vst.msk [vmem:[#allocation4 + $0x8] sm:$0xff] %vm884, %v1723
        %1727 = vrot.lane.b32.xlu0 %v878, 96
        %v1728 = vpop.permute.xlu0 %1727
        %1729 = vrot.lane.b32.xlu0 %v881, 96
        %v1730 = vpop.permute.xlu0 %1729
        %v1731 = vsel %vm884, %v1728, 0
        %v1733 = vsel %vm884, %v1730, 0
        %1735 = vmatprep.subr.mxu0 0.0
        %1736 = vmatpush1.xpose.msra.mxu0 %v1733
        %1737 = vmatprep.subr.mxu0 0.0
        %1738 = vmatpush1.xpose.msra.mxu0 0.0
        %1739 = vmatprep.subr.mxu0 0.0
        %1740 = vmatpush1.xpose.msra.mxu0 0.0
        %1741 = vmatprep.subr.mxu0 0.0
        %1742 = vmatpush1.xpose.msra.mxu0 0.0
        %1743 = vmatprep.subr.mxu0 0.0
        %1744 = vmatpush1.xpose.msra.mxu0 0.0
        %1745 = vmatprep.subr.mxu0 0.0
        %1746 = vmatpush1.xpose.msra.mxu0 0.0
        %1747 = vmatprep.subr.mxu0 0.0
        %1748 = vmatpush1.xpose.msra.mxu0 0.0
        %1749 = vmatprep.subr.mxu0 0.0
        %1750 = vmatpush1.xpose.msra.mxu0 0.0
        %1751 = vmatprep.subr.mxu0 0.0
        %1752 = vmatpush1.xpose.msra.mxu0 0.0
        %1753 = vmatprep.subr.mxu0 0.0
        %1754 = vmatpush1.xpose.msra.mxu0 0.0
        %1755 = vmatprep.subr.mxu0 0.0
        %1756 = vmatpush1.xpose.msra.mxu0 0.0
        %1757 = vmatprep.subr.mxu0 0.0
        %1758 = vmatpush1.xpose.msra.mxu0 0.0
        %1759 = vmatprep.subr.mxu0 0.0
        %1760 = vmatpush1.xpose.msra.mxu0 0.0
        %1761 = vmatprep.subr.mxu0 0.0
        %1762 = vmatpush1.xpose.msra.mxu0 0.0
        %1763 = vmatprep.subr.mxu0 0.0
        %1764 = vmatpush1.xpose.msra.mxu0 0.0
        %1765 = vmatprep.subr.mxu0 0.0
        %1766 = vmatpush1.xpose.msra.mxu0 0.0
        %1767 = vmatprep.subr.mxu0 0.0
        %1768 = vmatpush1.xpose.msra.mxu0 0.0
        %1769 = vmatprep.subr.mxu0 0.0
        %1770 = vmatpush1.xpose.msra.mxu0 0.0
        %1771 = vmatprep.subr.mxu0 0.0
        %1772 = vmatpush1.xpose.msra.mxu0 0.0
        %1773 = vmatprep.subr.mxu0 0.0
        %1774 = vmatpush1.xpose.msra.mxu0 0.0
        %1775 = vmatprep.subr.mxu0 0.0
        %1776 = vmatpush1.xpose.msra.mxu0 0.0
        %1777 = vmatprep.subr.mxu0 0.0
        %1778 = vmatpush1.xpose.msra.mxu0 0.0
        %1779 = vmatprep.subr.mxu0 0.0
        %1780 = vmatpush1.xpose.msra.mxu0 0.0
        %1781 = vmatprep.subr.mxu0 0.0
        %1782 = vmatpush1.xpose.msra.mxu0 0.0
        %1783 = vmatprep.subr.mxu0 0.0
        %1784 = vmatpush1.xpose.msra.mxu0 0.0
        %1785 = vmatprep.subr.mxu0 0.0
        %1786 = vmatpush1.xpose.msra.mxu0 0.0
        %1787 = vmatprep.subr.mxu0 0.0
        %1788 = vmatpush1.xpose.msra.mxu0 0.0
        %1789 = vmatprep.subr.mxu0 0.0
        %1790 = vmatpush1.xpose.msra.mxu0 0.0
        %1791 = vmatprep.subr.mxu0 0.0
        %1792 = vmatpush1.xpose.msra.mxu0 0.0
        %1793 = vmatprep.subr.mxu0 0.0
        %1794 = vmatpush1.xpose.msra.mxu0 0.0
        %1795 = vmatprep.subr.mxu0 0.0
        %1796 = vmatpush1.xpose.msra.mxu0 0.0
        %1797 = vmatprep.subr.mxu0 0.0
        %1798 = vmatpush1.xpose.msra.mxu0 0.0
        %1799 = vmatprep.mubr.f32.mxu0 0.0
        %1800 = vmatmul.mubr.f32.gmra.mrb[0].mxu0 %v1731
        %v1801 = vpop.f32.mrb[0].mxu0
        %v1802 = vadd.f32 0.0, %v1801
        %v1803 = vpop.f32.mrb[0].mxu0
        %1804 = vdwg.mxu0
        %v1805 = vmul.f32 %v1802, 0.0625
        %v1806 = vsel %vm962, %v1805, -inf
        %1807 = vmax.xlane.f32.xlu0 %v1806
        %v1808 = vpop.xlane.xlu0 %1807
        %v1809 = vsub.f32 %v1805, %v1808
        %v1810 = vmul.f32 %v1809, 1.442695
        %v1811 = vpow.pop %v1810
        %v1812 = vsel %vm962, %v1811, 0.0
        %1813 = vadd.xlane.f32.xlu0 %v1812
        %v1814 = vpop.xlane.xlu0 %1813
        %v1815 = vrcp.pop %v1814
        %v1816 = vmul.f32 %v1811, %v1815
        %1818 = vrot.lane.b32.xlu0 %v883, 96
        %v1819 = vpop.permute.xlu0 %1818
        %v1822 = vsel %vm962, %v1816, 0
        %1824 = vmatprep.subr.mxu0 0.0
        %1825 = vmatpush1.msra.mxu0 %v1819
        %1826 = vmatprep.subr.mxu0 0.0
        %1827 = vmatpush1.msra.mxu0 0.0
        %1828 = vmatprep.subr.mxu0 0.0
        %1829 = vmatpush1.msra.mxu0 0.0
        %1830 = vmatprep.subr.mxu0 0.0
        %1831 = vmatpush1.msra.mxu0 0.0
        %1832 = vmatprep.subr.mxu0 0.0
        %1833 = vmatpush1.msra.mxu0 0.0
        %1834 = vmatprep.subr.mxu0 0.0
        %1835 = vmatpush1.msra.mxu0 0.0
        %1836 = vmatprep.subr.mxu0 0.0
        %1837 = vmatpush1.msra.mxu0 0.0
        %1838 = vmatprep.subr.mxu0 0.0
        %1839 = vmatpush1.msra.mxu0 0.0
        %1840 = vmatprep.subr.mxu0 0.0
        %1841 = vmatpush1.msra.mxu0 0.0
        %1842 = vmatprep.subr.mxu0 0.0
        %1843 = vmatpush1.msra.mxu0 0.0
        %1844 = vmatprep.subr.mxu0 0.0
        %1845 = vmatpush1.msra.mxu0 0.0
        %1846 = vmatprep.subr.mxu0 0.0
        %1847 = vmatpush1.msra.mxu0 0.0
        %1848 = vmatprep.subr.mxu0 0.0
        %1849 = vmatpush1.msra.mxu0 0.0
        %1850 = vmatprep.subr.mxu0 0.0
        %1851 = vmatpush1.msra.mxu0 0.0
        %1852 = vmatprep.subr.mxu0 0.0
        %1853 = vmatpush1.msra.mxu0 0.0
        %1854 = vmatprep.subr.mxu0 0.0
        %1855 = vmatpush1.msra.mxu0 0.0
        %1856 = vmatprep.subr.mxu0 0.0
        %1857 = vmatpush1.msra.mxu0 0.0
        %1858 = vmatprep.subr.mxu0 0.0
        %1859 = vmatpush1.msra.mxu0 0.0
        %1860 = vmatprep.subr.mxu0 0.0
        %1861 = vmatpush1.msra.mxu0 0.0
        %1862 = vmatprep.subr.mxu0 0.0
        %1863 = vmatpush1.msra.mxu0 0.0
        %1864 = vmatprep.subr.mxu0 0.0
        %1865 = vmatpush1.msra.mxu0 0.0
        %1866 = vmatprep.subr.mxu0 0.0
        %1867 = vmatpush1.msra.mxu0 0.0
        %1868 = vmatprep.subr.mxu0 0.0
        %1869 = vmatpush1.msra.mxu0 0.0
        %1870 = vmatprep.subr.mxu0 0.0
        %1871 = vmatpush1.msra.mxu0 0.0
        %1872 = vmatprep.subr.mxu0 0.0
        %1873 = vmatpush1.msra.mxu0 0.0
        %1874 = vmatprep.subr.mxu0 0.0
        %1875 = vmatpush1.msra.mxu0 0.0
        %1876 = vmatprep.subr.mxu0 0.0
        %1877 = vmatpush1.msra.mxu0 0.0
        %1878 = vmatprep.subr.mxu0 0.0
        %1879 = vmatpush1.msra.mxu0 0.0
        %1880 = vmatprep.subr.mxu0 0.0
        %1881 = vmatpush1.msra.mxu0 0.0
        %1882 = vmatprep.subr.mxu0 0.0
        %1883 = vmatpush1.msra.mxu0 0.0
        %1884 = vmatprep.subr.mxu0 0.0
        %1885 = vmatpush1.msra.mxu0 0.0
        %1886 = vmatprep.subr.mxu0 0.0
        %1887 = vmatpush1.msra.mxu0 0.0
        %1888 = vmatprep.mubr.f32.mxu0 0.0
        %1889 = vmatmul.mubr.f32.gmra.mrb[0].mxu0 %v1822
        %v1890 = vpop.f32.mrb[0].mxu0
        %v1891 = vadd.f32 0.0, %v1890
        %v1892 = vpop.f32.mrb[0].mxu0
        %1893 = vdwg.mxu0
        %1895 = vrot.lane.b32.xlu0 %v1891, 32
        %v1896 = vpop.permute.xlu0 %1895
        %1898 = vst.msk [vmem:[#allocation4 + $0x8] sm:$0xff] %vm1219, %v1896
        %1899 = vrot.lane.b32.xlu0 %v878, 64
        %v1900 = vpop.permute.xlu0 %1899
        %1901 = vrot.lane.b32.xlu0 %v881, 64
        %v1902 = vpop.permute.xlu0 %1901
        %v1903 = vsel %vm884, %v1900, 0
        %v1905 = vsel %vm884, %v1902, 0
        %1907 = vmatprep.subr.mxu0 0.0
        %1908 = vmatpush1.xpose.msra.mxu0 %v1905
        %1909 = vmatprep.subr.mxu0 0.0
        %1910 = vmatpush1.xpose.msra.mxu0 0.0
        %1911 = vmatprep.subr.mxu0 0.0
        %1912 = vmatpush1.xpose.msra.mxu0 0.0
        %1913 = vmatprep.subr.mxu0 0.0
        %1914 = vmatpush1.xpose.msra.mxu0 0.0
        %1915 = vmatprep.subr.mxu0 0.0
        %1916 = vmatpush1.xpose.msra.mxu0 0.0
        %1917 = vmatprep.subr.mxu0 0.0
        %1918 = vmatpush1.xpose.msra.mxu0 0.0
        %1919 = vmatprep.subr.mxu0 0.0
        %1920 = vmatpush1.xpose.msra.mxu0 0.0
        %1921 = vmatprep.subr.mxu0 0.0
        %1922 = vmatpush1.xpose.msra.mxu0 0.0
        %1923 = vmatprep.subr.mxu0 0.0
        %1924 = vmatpush1.xpose.msra.mxu0 0.0
        %1925 = vmatprep.subr.mxu0 0.0
        %1926 = vmatpush1.xpose.msra.mxu0 0.0
        %1927 = vmatprep.subr.mxu0 0.0
        %1928 = vmatpush1.xpose.msra.mxu0 0.0
        %1929 = vmatprep.subr.mxu0 0.0
        %1930 = vmatpush1.xpose.msra.mxu0 0.0
        %1931 = vmatprep.subr.mxu0 0.0
        %1932 = vmatpush1.xpose.msra.mxu0 0.0
        %1933 = vmatprep.subr.mxu0 0.0
        %1934 = vmatpush1.xpose.msra.mxu0 0.0
        %1935 = vmatprep.subr.mxu0 0.0
        %1936 = vmatpush1.xpose.msra.mxu0 0.0
        %1937 = vmatprep.subr.mxu0 0.0
        %1938 = vmatpush1.xpose.msra.mxu0 0.0
        %1939 = vmatprep.subr.mxu0 0.0
        %1940 = vmatpush1.xpose.msra.mxu0 0.0
        %1941 = vmatprep.subr.mxu0 0.0
        %1942 = vmatpush1.xpose.msra.mxu0 0.0
        %1943 = vmatprep.subr.mxu0 0.0
        %1944 = vmatpush1.xpose.msra.mxu0 0.0
        %1945 = vmatprep.subr.mxu0 0.0
        %1946 = vmatpush1.xpose.msra.mxu0 0.0
        %1947 = vmatprep.subr.mxu0 0.0
        %1948 = vmatpush1.xpose.msra.mxu0 0.0
        %1949 = vmatprep.subr.mxu0 0.0
        %1950 = vmatpush1.xpose.msra.mxu0 0.0
        %1951 = vmatprep.subr.mxu0 0.0
        %1952 = vmatpush1.xpose.msra.mxu0 0.0
        %1953 = vmatprep.subr.mxu0 0.0
        %1954 = vmatpush1.xpose.msra.mxu0 0.0
        %1955 = vmatprep.subr.mxu0 0.0
        %1956 = vmatpush1.xpose.msra.mxu0 0.0
        %1957 = vmatprep.subr.mxu0 0.0
        %1958 = vmatpush1.xpose.msra.mxu0 0.0
        %1959 = vmatprep.subr.mxu0 0.0
        %1960 = vmatpush1.xpose.msra.mxu0 0.0
        %1961 = vmatprep.subr.mxu0 0.0
        %1962 = vmatpush1.xpose.msra.mxu0 0.0
        %1963 = vmatprep.subr.mxu0 0.0
        %1964 = vmatpush1.xpose.msra.mxu0 0.0
        %1965 = vmatprep.subr.mxu0 0.0
        %1966 = vmatpush1.xpose.msra.mxu0 0.0
        %1967 = vmatprep.subr.mxu0 0.0
        %1968 = vmatpush1.xpose.msra.mxu0 0.0
        %1969 = vmatprep.subr.mxu0 0.0
        %1970 = vmatpush1.xpose.msra.mxu0 0.0
        %1971 = vmatprep.mubr.f32.mxu0 0.0
        %1972 = vmatmul.mubr.f32.gmra.mrb[0].mxu0 %v1903
        %v1973 = vpop.f32.mrb[0].mxu0
        %v1974 = vadd.f32 0.0, %v1973
        %v1975 = vpop.f32.mrb[0].mxu0
        %1976 = vdwg.mxu0
        %v1977 = vmul.f32 %v1974, 0.0625
        %v1978 = vsel %vm962, %v1977, -inf
        %1979 = vmax.xlane.f32.xlu0 %v1978
        %v1980 = vpop.xlane.xlu0 %1979
        %v1981 = vsub.f32 %v1977, %v1980
        %v1982 = vmul.f32 %v1981, 1.442695
        %v1983 = vpow.pop %v1982
        %v1984 = vsel %vm962, %v1983, 0.0
        %1985 = vadd.xlane.f32.xlu0 %v1984
        %v1986 = vpop.xlane.xlu0 %1985
        %v1987 = vrcp.pop %v1986
        %v1988 = vmul.f32 %v1983, %v1987
        %1989 = vrot.lane.b32.xlu0 %v883, 64
        %v1990 = vpop.permute.xlu0 %1989
        %v1993 = vsel %vm962, %v1988, 0
        %1995 = vmatprep.subr.mxu0 0.0
        %1996 = vmatpush1.msra.mxu0 %v1990
        %1997 = vmatprep.subr.mxu0 0.0
        %1998 = vmatpush1.msra.mxu0 0.0
        %1999 = vmatprep.subr.mxu0 0.0
        %2000 = vmatpush1.msra.mxu0 0.0
        %2001 = vmatprep.subr.mxu0 0.0
        %2002 = vmatpush1.msra.mxu0 0.0
        %2003 = vmatprep.subr.mxu0 0.0
        %2004 = vmatpush1.msra.mxu0 0.0
        %2005 = vmatprep.subr.mxu0 0.0
        %2006 = vmatpush1.msra.mxu0 0.0
        %2007 = vmatprep.subr.mxu0 0.0
        %2008 = vmatpush1.msra.mxu0 0.0
        %2009 = vmatprep.subr.mxu0 0.0
        %2010 = vmatpush1.msra.mxu0 0.0
        %2011 = vmatprep.subr.mxu0 0.0
        %2012 = vmatpush1.msra.mxu0 0.0
        %2013 = vmatprep.subr.mxu0 0.0
        %2014 = vmatpush1.msra.mxu0 0.0
        %2015 = vmatprep.subr.mxu0 0.0
        %2016 = vmatpush1.msra.mxu0 0.0
        %2017 = vmatprep.subr.mxu0 0.0
        %2018 = vmatpush1.msra.mxu0 0.0
        %2019 = vmatprep.subr.mxu0 0.0
        %2020 = vmatpush1.msra.mxu0 0.0
        %2021 = vmatprep.subr.mxu0 0.0
        %2022 = vmatpush1.msra.mxu0 0.0
        %2023 = vmatprep.subr.mxu0 0.0
        %2024 = vmatpush1.msra.mxu0 0.0
        %2025 = vmatprep.subr.mxu0 0.0
        %2026 = vmatpush1.msra.mxu0 0.0
        %2027 = vmatprep.subr.mxu0 0.0
        %2028 = vmatpush1.msra.mxu0 0.0
        %2029 = vmatprep.subr.mxu0 0.0
        %2030 = vmatpush1.msra.mxu0 0.0
        %2031 = vmatprep.subr.mxu0 0.0
        %2032 = vmatpush1.msra.mxu0 0.0
        %2033 = vmatprep.subr.mxu0 0.0
        %2034 = vmatpush1.msra.mxu0 0.0
        %2035 = vmatprep.subr.mxu0 0.0
        %2036 = vmatpush1.msra.mxu0 0.0
        %2037 = vmatprep.subr.mxu0 0.0
        %2038 = vmatpush1.msra.mxu0 0.0
        %2039 = vmatprep.subr.mxu0 0.0
        %2040 = vmatpush1.msra.mxu0 0.0
        %2041 = vmatprep.subr.mxu0 0.0
        %2042 = vmatpush1.msra.mxu0 0.0
        %2043 = vmatprep.subr.mxu0 0.0
        %2044 = vmatpush1.msra.mxu0 0.0
        %2045 = vmatprep.subr.mxu0 0.0
        %2046 = vmatpush1.msra.mxu0 0.0
        %2047 = vmatprep.subr.mxu0 0.0
        %2048 = vmatpush1.msra.mxu0 0.0
        %2049 = vmatprep.subr.mxu0 0.0
        %2050 = vmatpush1.msra.mxu0 0.0
        %2051 = vmatprep.subr.mxu0 0.0
        %2052 = vmatpush1.msra.mxu0 0.0
        %2053 = vmatprep.subr.mxu0 0.0
        %2054 = vmatpush1.msra.mxu0 0.0
        %2055 = vmatprep.subr.mxu0 0.0
        %2056 = vmatpush1.msra.mxu0 0.0
        %2057 = vmatprep.subr.mxu0 0.0
        %2058 = vmatpush1.msra.mxu0 0.0
        %2059 = vmatprep.mubr.f32.mxu0 0.0
        %2060 = vmatmul.mubr.f32.gmra.mrb[0].mxu0 %v1993
        %v2061 = vpop.f32.mrb[0].mxu0
        %v2062 = vadd.f32 0.0, %v2061
        %v2063 = vpop.f32.mrb[0].mxu0
        %2064 = vdwg.mxu0
        %2066 = vrot.lane.b32.xlu0 %v2062, 64
        %v2067 = vpop.permute.xlu0 %2066
        %2069 = vst.msk [vmem:[#allocation4 + $0x8] sm:$0xff] %vm1391, %v2067
        %2070 = vrot.lane.b32.xlu0 %v878, 32
        %v2071 = vpop.permute.xlu0 %2070
        %2072 = vrot.lane.b32.xlu0 %v881, 32
        %v2073 = vpop.permute.xlu0 %2072
        %v2074 = vsel %vm884, %v2071, 0
        %v2076 = vsel %vm884, %v2073, 0
        %2078 = vmatprep.subr.mxu0 0.0
        %2079 = vmatpush1.xpose.msra.mxu0 %v2076
        %2080 = vmatprep.subr.mxu0 0.0
        %2081 = vmatpush1.xpose.msra.mxu0 0.0
        %2082 = vmatprep.subr.mxu0 0.0
        %2083 = vmatpush1.xpose.msra.mxu0 0.0
        %2084 = vmatprep.subr.mxu0 0.0
        %2085 = vmatpush1.xpose.msra.mxu0 0.0
        %2086 = vmatprep.subr.mxu0 0.0
        %2087 = vmatpush1.xpose.msra.mxu0 0.0
        %2088 = vmatprep.subr.mxu0 0.0
        %2089 = vmatpush1.xpose.msra.mxu0 0.0
        %2090 = vmatprep.subr.mxu0 0.0
        %2091 = vmatpush1.xpose.msra.mxu0 0.0
        %2092 = vmatprep.subr.mxu0 0.0
        %2093 = vmatpush1.xpose.msra.mxu0 0.0
        %2094 = vmatprep.subr.mxu0 0.0
        %2095 = vmatpush1.xpose.msra.mxu0 0.0
        %2096 = vmatprep.subr.mxu0 0.0
        %2097 = vmatpush1.xpose.msra.mxu0 0.0
        %2098 = vmatprep.subr.mxu0 0.0
        %2099 = vmatpush1.xpose.msra.mxu0 0.0
        %2100 = vmatprep.subr.mxu0 0.0
        %2101 = vmatpush1.xpose.msra.mxu0 0.0
        %2102 = vmatprep.subr.mxu0 0.0
        %2103 = vmatpush1.xpose.msra.mxu0 0.0
        %2104 = vmatprep.subr.mxu0 0.0
        %2105 = vmatpush1.xpose.msra.mxu0 0.0
        %2106 = vmatprep.subr.mxu0 0.0
        %2107 = vmatpush1.xpose.msra.mxu0 0.0
        %2108 = vmatprep.subr.mxu0 0.0
        %2109 = vmatpush1.xpose.msra.mxu0 0.0
        %2110 = vmatprep.subr.mxu0 0.0
        %2111 = vmatpush1.xpose.msra.mxu0 0.0
        %2112 = vmatprep.subr.mxu0 0.0
        %2113 = vmatpush1.xpose.msra.mxu0 0.0
        %2114 = vmatprep.subr.mxu0 0.0
        %2115 = vmatpush1.xpose.msra.mxu0 0.0
        %2116 = vmatprep.subr.mxu0 0.0
        %2117 = vmatpush1.xpose.msra.mxu0 0.0
        %2118 = vmatprep.subr.mxu0 0.0
        %2119 = vmatpush1.xpose.msra.mxu0 0.0
        %2120 = vmatprep.subr.mxu0 0.0
        %2121 = vmatpush1.xpose.msra.mxu0 0.0
        %2122 = vmatprep.subr.mxu0 0.0
        %2123 = vmatpush1.xpose.msra.mxu0 0.0
        %2124 = vmatprep.subr.mxu0 0.0
        %2125 = vmatpush1.xpose.msra.mxu0 0.0
        %2126 = vmatprep.subr.mxu0 0.0
        %2127 = vmatpush1.xpose.msra.mxu0 0.0
        %2128 = vmatprep.subr.mxu0 0.0
        %2129 = vmatpush1.xpose.msra.mxu0 0.0
        %2130 = vmatprep.subr.mxu0 0.0
        %2131 = vmatpush1.xpose.msra.mxu0 0.0
        %2132 = vmatprep.subr.mxu0 0.0
        %2133 = vmatpush1.xpose.msra.mxu0 0.0
        %2134 = vmatprep.subr.mxu0 0.0
        %2135 = vmatpush1.xpose.msra.mxu0 0.0
        %2136 = vmatprep.subr.mxu0 0.0
        %2137 = vmatpush1.xpose.msra.mxu0 0.0
        %2138 = vmatprep.subr.mxu0 0.0
        %2139 = vmatpush1.xpose.msra.mxu0 0.0
        %2140 = vmatprep.subr.mxu0 0.0
        %2141 = vmatpush1.xpose.msra.mxu0 0.0
        %2142 = vmatprep.mubr.f32.mxu0 0.0
        %2143 = vmatmul.mubr.f32.gmra.mrb[0].mxu0 %v2074
        %v2144 = vpop.f32.mrb[0].mxu0
        %v2145 = vadd.f32 0.0, %v2144
        %v2146 = vpop.f32.mrb[0].mxu0
        %2147 = vdwg.mxu0
        %v2148 = vmul.f32 %v2145, 0.0625
        %v2149 = vsel %vm962, %v2148, -inf
        %2150 = vmax.xlane.f32.xlu0 %v2149
        %v2151 = vpop.xlane.xlu0 %2150
        %v2152 = vsub.f32 %v2148, %v2151
        %v2153 = vmul.f32 %v2152, 1.442695
        %v2154 = vpow.pop %v2153
        %v2155 = vsel %vm962, %v2154, 0.0
        %2156 = vadd.xlane.f32.xlu0 %v2155
        %v2157 = vpop.xlane.xlu0 %2156
        %v2158 = vrcp.pop %v2157
        %v2159 = vmul.f32 %v2154, %v2158
        %2160 = vrot.lane.b32.xlu0 %v883, 32
        %v2161 = vpop.permute.xlu0 %2160
        %v2164 = vsel %vm962, %v2159, 0
        %2166 = vmatprep.subr.mxu0 0.0
        %2167 = vmatpush1.msra.mxu0 %v2161
        %2168 = vmatprep.subr.mxu0 0.0
        %2169 = vmatpush1.msra.mxu0 0.0
        %2170 = vmatprep.subr.mxu0 0.0
        %2171 = vmatpush1.msra.mxu0 0.0
        %2172 = vmatprep.subr.mxu0 0.0
        %2173 = vmatpush1.msra.mxu0 0.0
        %2174 = vmatprep.subr.mxu0 0.0
        %2175 = vmatpush1.msra.mxu0 0.0
        %2176 = vmatprep.subr.mxu0 0.0
        %2177 = vmatpush1.msra.mxu0 0.0
        %2178 = vmatprep.subr.mxu0 0.0
        %2179 = vmatpush1.msra.mxu0 0.0
        %2180 = vmatprep.subr.mxu0 0.0
        %2181 = vmatpush1.msra.mxu0 0.0
        %2182 = vmatprep.subr.mxu0 0.0
        %2183 = vmatpush1.msra.mxu0 0.0
        %2184 = vmatprep.subr.mxu0 0.0
        %2185 = vmatpush1.msra.mxu0 0.0
        %2186 = vmatprep.subr.mxu0 0.0
        %2187 = vmatpush1.msra.mxu0 0.0
        %2188 = vmatprep.subr.mxu0 0.0
        %2189 = vmatpush1.msra.mxu0 0.0
        %2190 = vmatprep.subr.mxu0 0.0
        %2191 = vmatpush1.msra.mxu0 0.0
        %2192 = vmatprep.subr.mxu0 0.0
        %2193 = vmatpush1.msra.mxu0 0.0
        %2194 = vmatprep.subr.mxu0 0.0
        %2195 = vmatpush1.msra.mxu0 0.0
        %2196 = vmatprep.subr.mxu0 0.0
        %2197 = vmatpush1.msra.mxu0 0.0
        %2198 = vmatprep.subr.mxu0 0.0
        %2199 = vmatpush1.msra.mxu0 0.0
        %2200 = vmatprep.subr.mxu0 0.0
        %2201 = vmatpush1.msra.mxu0 0.0
        %2202 = vmatprep.subr.mxu0 0.0
        %2203 = vmatpush1.msra.mxu0 0.0
        %2204 = vmatprep.subr.mxu0 0.0
        %2205 = vmatpush1.msra.mxu0 0.0
        %2206 = vmatprep.subr.mxu0 0.0
        %2207 = vmatpush1.msra.mxu0 0.0
        %2208 = vmatprep.subr.mxu0 0.0
        %2209 = vmatpush1.msra.mxu0 0.0
        %2210 = vmatprep.subr.mxu0 0.0
        %2211 = vmatpush1.msra.mxu0 0.0
        %2212 = vmatprep.subr.mxu0 0.0
        %2213 = vmatpush1.msra.mxu0 0.0
        %2214 = vmatprep.subr.mxu0 0.0
        %2215 = vmatpush1.msra.mxu0 0.0
        %2216 = vmatprep.subr.mxu0 0.0
        %2217 = vmatpush1.msra.mxu0 0.0
        %2218 = vmatprep.subr.mxu0 0.0
        %2219 = vmatpush1.msra.mxu0 0.0
        %2220 = vmatprep.subr.mxu0 0.0
        %2221 = vmatpush1.msra.mxu0 0.0
        %2222 = vmatprep.subr.mxu0 0.0
        %2223 = vmatpush1.msra.mxu0 0.0
        %2224 = vmatprep.subr.mxu0 0.0
        %2225 = vmatpush1.msra.mxu0 0.0
        %2226 = vmatprep.subr.mxu0 0.0
        %2227 = vmatpush1.msra.mxu0 0.0
        %2228 = vmatprep.subr.mxu0 0.0
        %2229 = vmatpush1.msra.mxu0 0.0
        %2230 = vmatprep.mubr.f32.mxu0 0.0
        %2231 = vmatmul.mubr.f32.gmra.mrb[0].mxu0 %v2164
        %v2232 = vpop.f32.mrb[0].mxu0
        %v2233 = vadd.f32 0.0, %v2232
        %v2234 = vpop.f32.mrb[0].mxu0
        %2235 = vdwg.mxu0
        %2237 = vrot.lane.b32.xlu0 %v2233, 96
        %v2238 = vpop.permute.xlu0 %2237
        %2240 = vst.msk [vmem:[#allocation4 + $0x8] sm:$0xff] %vm1563, %v2238
        %v2241 = vld [vmem:[#allocation4] sm:$0xff]
        %v2242 = vld [vmem:[#allocation4 + $0x8] sm:$0xff]
        %v2243 = vld [vmem:[#allocation13] sm:$0xff]
        %v2244 = vld [vmem:[#allocation13 + $0x8] sm:$0xff]
        %v2245 = vld [vmem:[#allocation13 + $0x10] sm:$0xff]
        %v2246 = vld [vmem:[#allocation13 + $0x18] sm:$0xff]
        %v2247 = vld [vmem:[#allocation13 + $0x20] sm:$0xff]
        %v2248 = vld [vmem:[#allocation13 + $0x28] sm:$0xff]
        %v2249 = vld [vmem:[#allocation13 + $0x30] sm:$0xff]
        %v2250 = vld [vmem:[#allocation13 + $0x38] sm:$0xff]
        %v2251 = vld [vmem:[#allocation13 + $0x40] sm:$0xff]
        %v2252 = vld [vmem:[#allocation13 + $0x48] sm:$0xff]
        %v2253 = vld [vmem:[#allocation13 + $0x50] sm:$0xff]
        %v2254 = vld [vmem:[#allocation13 + $0x58] sm:$0xff]
        %v2255 = vld [vmem:[#allocation13 + $0x60] sm:$0xff]
        %v2256 = vld [vmem:[#allocation13 + $0x68] sm:$0xff]
        %v2257 = vld [vmem:[#allocation13 + $0x70] sm:$0xff]
        %v2258 = vld [vmem:[#allocation13 + $0x78] sm:$0xff]
        %v2259 = vld [vmem:[#allocation13 + $0x80] sm:$0xff]
        %v2260 = vld [vmem:[#allocation13 + $0x88] sm:$0xff]
        %v2261 = vld [vmem:[#allocation13 + $0x90] sm:$0xff]
        %v2262 = vld [vmem:[#allocation13 + $0x98] sm:$0xff]
        %v2263 = vld [vmem:[#allocation13 + $0xa0] sm:$0xff]
        %v2264 = vld [vmem:[#allocation13 + $0xa8] sm:$0xff]
        %v2265 = vld [vmem:[#allocation13 + $0xb0] sm:$0xff]
        %v2266 = vld [vmem:[#allocation13 + $0xb8] sm:$0xff]
        %v2267 = vld [vmem:[#allocation13 + $0xc0] sm:$0xff]
        %v2268 = vld [vmem:[#allocation13 + $0xc8] sm:$0xff]
        %v2269 = vld [vmem:[#allocation13 + $0xd0] sm:$0xff]
        %v2270 = vld [vmem:[#allocation13 + $0xd8] sm:$0xff]
        %v2271 = vld [vmem:[#allocation13 + $0xe0] sm:$0xff]
        %v2272 = vld [vmem:[#allocation13 + $0xe8] sm:$0xff]
        %v2273 = vld [vmem:[#allocation13 + $0xf0] sm:$0xff]
        %v2274 = vld [vmem:[#allocation13 + $0xf8] sm:$0xff]
        %v2275 = vld [vmem:[#allocation13 + $0x100] sm:$0xff]
        %v2276 = vld [vmem:[#allocation13 + $0x108] sm:$0xff]
        %v2277 = vld [vmem:[#allocation13 + $0x110] sm:$0xff]
        %v2278 = vld [vmem:[#allocation13 + $0x118] sm:$0xff]
        %v2279 = vld [vmem:[#allocation13 + $0x120] sm:$0xff]
        %v2280 = vld [vmem:[#allocation13 + $0x128] sm:$0xff]
        %v2281 = vld [vmem:[#allocation13 + $0x130] sm:$0xff]
        %v2282 = vld [vmem:[#allocation13 + $0x138] sm:$0xff]
        %v2283 = vld [vmem:[#allocation13 + $0x140] sm:$0xff]
        %v2284 = vld [vmem:[#allocation13 + $0x148] sm:$0xff]
        %v2285 = vld [vmem:[#allocation13 + $0x150] sm:$0xff]
        %v2286 = vld [vmem:[#allocation13 + $0x158] sm:$0xff]
        %v2287 = vld [vmem:[#allocation13 + $0x160] sm:$0xff]
        %v2288 = vld [vmem:[#allocation13 + $0x168] sm:$0xff]
        %v2289 = vld [vmem:[#allocation13 + $0x170] sm:$0xff]
        %v2290 = vld [vmem:[#allocation13 + $0x178] sm:$0xff]
        %v2291 = vld [vmem:[#allocation13 + $0x180] sm:$0xff]
        %v2292 = vld [vmem:[#allocation13 + $0x188] sm:$0xff]
        %v2293 = vld [vmem:[#allocation13 + $0x190] sm:$0xff]
        %v2294 = vld [vmem:[#allocation13 + $0x198] sm:$0xff]
        %v2295 = vld [vmem:[#allocation13 + $0x1a0] sm:$0xff]
        %v2296 = vld [vmem:[#allocation13 + $0x1a8] sm:$0xff]
        %v2297 = vld [vmem:[#allocation13 + $0x1b0] sm:$0xff]
        %v2298 = vld [vmem:[#allocation13 + $0x1b8] sm:$0xff]
        %v2299 = vld [vmem:[#allocation13 + $0x1c0] sm:$0xff]
        %v2300 = vld [vmem:[#allocation13 + $0x1c8] sm:$0xff]
        %v2301 = vld [vmem:[#allocation13 + $0x1d0] sm:$0xff]
        %v2302 = vld [vmem:[#allocation13 + $0x1d8] sm:$0xff]
        %v2303 = vld [vmem:[#allocation13 + $0x1e0] sm:$0xff]
        %v2304 = vld [vmem:[#allocation13 + $0x1e8] sm:$0xff]
        %v2305 = vld [vmem:[#allocation13 + $0x1f0] sm:$0xff]
        %v2306 = vld [vmem:[#allocation13 + $0x1f8] sm:$0xff]
        %v2307 = vld [vmem:[%s8] sm:$0x3]
        %v2309 = vlaneseq
        %v2310 = vshrl.u32 %v2309, 7
        %v2311 = vsub.s32 0, %v2310
        %v2312 = vrot.slane %v2307, %v2311
        %v2313 = vlaneseq
        %v2314 = vshrl.u32 %v2313, 7
        %v2315 = vsub.s32 1, %v2314
        %v2316 = vrot.slane %v2307, %v2315
        %2319 = vmatprep.subr.mxu0 %v2244
        %2320 = vmatpush1.msra.mxu0 %v2243
        %2321 = vmatprep.subr.mxu0 %v2246
        %2322 = vmatpush1.msra.mxu0 %v2245
        %2323 = vmatprep.subr.mxu0 %v2248
        %2324 = vmatpush1.msra.mxu0 %v2247
        %2325 = vmatprep.subr.mxu0 %v2250
        %2326 = vmatpush1.msra.mxu0 %v2249
        %2327 = vmatprep.subr.mxu0 %v2252
        %2328 = vmatpush1.msra.mxu0 %v2251
        %2329 = vmatprep.subr.mxu0 %v2254
        %2330 = vmatpush1.msra.mxu0 %v2253
        %2331 = vmatprep.subr.mxu0 %v2256
        %2332 = vmatpush1.msra.mxu0 %v2255
        %2333 = vmatprep.subr.mxu0 %v2258
        %2334 = vmatpush1.msra.mxu0 %v2257
        %2335 = vmatprep.subr.mxu0 %v2260
        %2336 = vmatpush1.msra.mxu0 %v2259
        %2337 = vmatprep.subr.mxu0 %v2262
        %2338 = vmatpush1.msra.mxu0 %v2261
        %2339 = vmatprep.subr.mxu0 %v2264
        %2340 = vmatpush1.msra.mxu0 %v2263
        %2341 = vmatprep.subr.mxu0 %v2266
        %2342 = vmatpush1.msra.mxu0 %v2265
        %2343 = vmatprep.subr.mxu0 %v2268
        %2344 = vmatpush1.msra.mxu0 %v2267
        %2345 = vmatprep.subr.mxu0 %v2270
        %2346 = vmatpush1.msra.mxu0 %v2269
        %2347 = vmatprep.subr.mxu0 %v2272
        %2348 = vmatpush1.msra.mxu0 %v2271
        %2349 = vmatprep.subr.mxu0 %v2274
        %2350 = vmatpush1.msra.mxu0 %v2273
        %2351 = vmatprep.subr.mxu0 %v2276
        %2352 = vmatpush1.msra.mxu0 %v2275
        %2353 = vmatprep.subr.mxu0 %v2278
        %2354 = vmatpush1.msra.mxu0 %v2277
        %2355 = vmatprep.subr.mxu0 %v2280
        %2356 = vmatpush1.msra.mxu0 %v2279
        %2357 = vmatprep.subr.mxu0 %v2282
        %2358 = vmatpush1.msra.mxu0 %v2281
        %2359 = vmatprep.subr.mxu0 %v2284
        %2360 = vmatpush1.msra.mxu0 %v2283
        %2361 = vmatprep.subr.mxu0 %v2286
        %2362 = vmatpush1.msra.mxu0 %v2285
        %2363 = vmatprep.subr.mxu0 %v2288
        %2364 = vmatpush1.msra.mxu0 %v2287
        %2365 = vmatprep.subr.mxu0 %v2290
        %2366 = vmatpush1.msra.mxu0 %v2289
        %2367 = vmatprep.subr.mxu0 %v2292
        %2368 = vmatpush1.msra.mxu0 %v2291
        %2369 = vmatprep.subr.mxu0 %v2294
        %2370 = vmatpush1.msra.mxu0 %v2293
        %2371 = vmatprep.subr.mxu0 %v2296
        %2372 = vmatpush1.msra.mxu0 %v2295
        %2373 = vmatprep.subr.mxu0 %v2298
        %2374 = vmatpush1.msra.mxu0 %v2297
        %2375 = vmatprep.subr.mxu0 %v2300
        %2376 = vmatpush1.msra.mxu0 %v2299
        %2377 = vmatprep.subr.mxu0 %v2302
        %2378 = vmatpush1.msra.mxu0 %v2301
        %2379 = vmatprep.subr.mxu0 %v2304
        %2380 = vmatpush1.msra.mxu0 %v2303
        %2381 = vmatprep.subr.mxu0 %v2306
        %2382 = vmatpush1.msra.mxu0 %v2305
        %2383 = vmatprep.mubr.f32.mxu0 %v2242
        %2384 = vmatmul.mubr.f32.gmra.mrb[0].mxu0 %v2241
        %v2385 = vpop.f32.mrb[0].mxu0
        %v2386 = vadd.f32 %v2312, %v2385
        %v2387 = vpop.f32.mrb[0].mxu0
        %v2388 = vadd.f32 %v2316, %v2387
        %2389 = vdwg.mxu0
        %2390 = vst [vmem:[%s420] sm:$0xff] %v2386
        %2391 = vst [vmem:[%s420 + $0x8] sm:$0xff] %v2388
        %s2392 = sand.u32 %s244, 1
        %s2393 = scalar_lea.sflag [#allocation7], %s2392
        %s2394 = sand.u32 %s244, 1
        %s2395 = smul.addr %s2394, 16
        %s2396 = scalar_lea.vmem [#allocation14], %s2395
        // Predicated region
        $region81: #{tpu_custom_call.1} parent=55 // pred_check
          %p2397 = pneg %p254
        $region82: #{tpu_custom_call.1} parent=55 // pred_check_branch
          %2399 = sbr.rel (%p2397) target = $region84
        $region83: #{tpu_custom_call.1} parent=55 // pred_region
          %s2401 = ssub.s32 256, 256
          %2402 = vsyncadd %s2393, %s2401
          %s2403 = smul.addr %s33, 2
          %s2404 = smul.addr %s32, 2
          %s2405 = sadd.s32 %s2403, %s2404
          %s2406 = smul.addr %s2405, 128
          %s2407 = scalar_lea.hbm %s9, %s2406
          %s2409 = sshll.u32 %s2396, 4
          %s2410 = int_to_ptr.vmem [resolvable:$true] %s2409
          %2412 = dma.vmem_to_hbm [thread:$0]  %s2410, 256, %s2407, %s2393
        $region84: #{tpu_custom_call.1} parent=55 // pred_fallthru
          _
      $region56: #{tpu_custom_call.1} parent=5 // pred_fallthru
        _
      %p2413 = scmp.le.s32.totalorder 2, %s23
      // Predicated region
      $region85: #{tpu_custom_call.1} parent=5 // pred_check
        %p2414 = pneg %p2413
      $region86: #{tpu_custom_call.1} parent=5 // pred_check_branch
        %2416 = sbr.rel (%p2414) target = $region88
      $region87: #{tpu_custom_call.1} parent=5 // pred_region
        %s2417 = ssub.s32 %s23, 2
        // Predicated region
        $region89: #{tpu_custom_call.1} parent=87 // pred_check
          %p2418 = pneg %p260
        $region90: #{tpu_custom_call.1} parent=87 // pred_check_branch
          %2420 = sbr.rel (%p2418) target = $region92
        $region91: #{tpu_custom_call.1} parent=87 // pred_region
          %s2421 = sand.u32 %s245, 1
          %s2422 = scalar_lea.sflag [#allocation7], %s2421
          %s2423 = sand.u32 %s245, 1
          %s2424 = smul.addr %s2423, 16
          %s2425 = scalar_lea.vmem [#allocation14], %s2424
          %2426 = dma.done %s2422, 256
        $region92: #{tpu_custom_call.1} parent=87 // pred_fallthru
          _
      $region88: #{tpu_custom_call.1} parent=5 // pred_fallthru
        _
    $region6: #{tpu_custom_call.1} parent=1 // loop_footer
      %s27 = sadd.s32 1, %s23
    $region7: #{tpu_custom_call.1} parent=1 // loop_footer_branch
      %22 = sbr.rel target = $region3
    $region8: #{tpu_custom_call.1} parent=1 // loop_exit
      _
    %2427 = vsyncpa [#allocation6], 1
    %s2428 = scalar_lea.sflag [#allocation6], 1
    %2429 = vsyncpa %s2428, 1
    %2430 = vsyncpa [#allocation9], 1
    %2431 = vsyncpa [#allocation12], 1
    %2432 = vsyncpa [#allocation7], 1
    %s2433 = scalar_lea.sflag [#allocation7], 1
    %2434 = vsyncpa %s2433, 1

</llo_original>
